<compile_context>
chip_gen: v5e
topology: v5e:2x2
jax: 0.10.0
libtpu: 0.0.40
codegen_flags: <defaults>
</compile_context>

<pallas_src>
import functools

import jax
import jax.numpy as jnp
import numpy as np
from jax import lax
from jax.experimental import pallas as pl
from jax.experimental.pallas import tpu as pltpu

_HIGHEST = jax.lax.Precision.HIGHEST

# VMEM budget for the pipelined (double-buffered) E-in + tanh(h)-out blocks.
# 8 MiB keeps the kernel safely under v5e's 16 MiB scoped default and leaves
# ample headroom on v6e (128 MiB) / v7x (64 MiB).
_PIPE_VMEM_BUDGET = 8 << 20


def _round_up(n, m):
    return ((n + m - 1) // m) * m


def _pick_time_block(n_steps, tb, hp, budget_bytes=_PIPE_VMEM_BUDGET, cap=64):
    """Largest divisor of n_steps whose double-buffered E/out blocks fit budget."""
    # bytes for E-in + th-out blocks, both double buffered, f32:
    #   2 * (2 * T * TB * Hp * 4) = 16 * T * TB * Hp
    max_t = max(1, budget_bytes // (16 * tb * hp))
    hi = min(max_t, cap, n_steps)
    best = 1
    for c in range(1, hi + 1):
        if n_steps % c == 0:
            best = c
    return best


# ---------------------------------------------------------------------------
# Pallas kernel: one grid step == T sequence time steps (serial recurrence).
# ---------------------------------------------------------------------------
def _lnn_rk4_kernel(dt,              # python float: 1/(S-1)
                    e_ref,           # (T, TB, Hp) f32   E_t = x_t@W_eff^T + b_eff
                    w_hh_ref,        # (Hp, Hp)    bf16  W_hh^T (zero padded)
                    inv_tau_ref,     # (1, Hp)     f32   1/tau  (padded with ones)
                    th_ref,          # (T, TB, Hp) f32   output: tanh(h_t)
                    h_scr,           # (TB, Hp)    f32   scratch: hidden state
                    th_scr):         # (TB, Hp)    f32   scratch: tanh(hidden)
    t_blk = pl.program_id(1)
    T = e_ref.shape[0]

    @pl.when(t_blk == 0)
    def _():
        # h starts at zeros for each batch block (torch.zeros(batch, hidden)).
        h_scr[...] = jnp.zeros_like(h_scr)
        th_scr[...] = jnp.zeros_like(th_scr)   # tanh(0) == 0

    w_hh = w_hh_ref[...]        # bf16, invariant across the grid (DMA'd once)
    inv_tau = inv_tau_ref[...]

    c_half = jnp.float32(0.5 * dt)
    c_sixth = jnp.float32(dt / 6.0)
    c_third = jnp.float32(dt / 3.0)
    c_full = jnp.float32(dt)

    def f(hh, thh, e):
        # bf16 MXU operands, f32 accumulate (tanh(h) bounded, W_hh ~1e-2).
        he = jnp.dot(thh.astype(jnp.bfloat16), w_hh,
                     preferred_element_type=jnp.float32)
        return (he - hh + e) * inv_tau

    def step_body(i, carry):
        h, th = carry                             # th == tanh(h), cached
        e = e_ref[i]                              # (TB, Hp)
        # Classical RK4, incrementally accumulated (one live k, one acc).
        k = f(h, th, e)                           # k1
        acc = h + c_sixth * k
        hs = h + c_half * k
        k = f(hs, jnp.tanh(hs), e)                # k2
        acc = acc + c_third * k
        hs = h + c_half * k
        k = f(hs, jnp.tanh(hs), e)                # k3
        acc = acc + c_third * k
        hs = h + c_full * k
        k = f(hs, jnp.tanh(hs), e)                # k4
        h_new = acc + c_sixth * k
        # NOTE: 4 full-tile tanh per step ride the single EUP slot; once the
        # matmuls are bf16 this is the likely roofline for large TB*Hp.
        th_new = jnp.tanh(h_new)
        th_ref[i] = th_new                        # lane-dense (Hp) store
        return h_new, th_new

    h, th = lax.fori_loop(0, T, step_body, (h_scr[...], th_scr[...]),
                          unroll=min(T, 8))       # partial unroll: LLO visibility
    h_scr[...] = h
    th_scr[...] = th


# ---------------------------------------------------------------------------
# Wrapper
# ---------------------------------------------------------------------------
@jax.jit
def liquid_neural_network_forward(x, params):
    """x: (batch, seq, input_size) float32 -> (batch, seq, output_size)."""
    B, S, Din = x.shape
    w_in, b_in = params["w_in"], params["b_in"]
    w_ih, w_hh = params["w_ih"], params["w_hh"]
    bias, tau = params["bias"], params["tau"]
    w_out, b_out = params["w_out"], params["b_out"]
    H = w_in.shape[0]
    O = w_out.shape[0]

    x = x.astype(jnp.float32)

    # --- fold input Linear + W_ih into one effective weight ------------------
    # input_effect_t = (x_t @ W_in^T + b_in) @ W_ih^T + bias
    #                = x_t @ (W_ih W_in)^T + (W_ih b_in + bias)
    w_eff = jnp.dot(w_ih, w_in, precision=_HIGHEST)           # (H, Din), tiny
    b_eff = jnp.dot(w_ih, b_in, precision=_HIGHEST) + bias    # (H,)

    # --- time step 0 is a no-op: dt = 0, h stays 0, output = b_out -----------
    out0 = jnp.broadcast_to(b_out, (B, 1, O))
    if S == 1:
        return out0
    n_steps = S - 1
    dt_all = float(1.0 / (S - 1))

    # --- padding to hardware tiles -------------------------------------------
    Hp = _round_up(H, 128)
    if B <= 128:
        Bp = _round_up(B, 8)
        if Bp >= 16:
            # Two batch blocks so the "parallel" axis engages both v7x TCs.
            TB = _round_up((Bp + 1) // 2, 8)
            Bp = 2 * TB
        else:
            TB = Bp
    else:
        # TODO(synk): on v6e, TB=256 fills the 256-wide MXU better for large B.
        Bp = _round_up(B, 128)
        TB = 128
    NB = Bp // TB
    T = _pick_time_block(n_steps, TB, Hp)
    NT = n_steps // T

    # Build E directly in the padded (S-1, Bp, Hp) kernel layout (skip t=0).
    x_pad = jnp.pad(x, ((0, Bp - B), (0, 0), (0, 0)))
    w_eff_p = jnp.pad(w_eff, ((0, Hp - H), (0, 0)))
    b_eff_p = jnp.pad(b_eff, (0, Hp - H))
    e_pad = jnp.einsum("bsd,hd->sbh", x_pad[:, 1:, :], w_eff_p) + b_eff_p

    w_hh_t = jnp.pad(w_hh.T, ((0, Hp - H), (0, Hp - H))).astype(jnp.bfloat16)
    inv_tau = jnp.pad((1.0 / tau).reshape(1, H), ((0, 0), (0, Hp - H)),
                      constant_values=1.0)

    # Explicit VMEM budget (keeps large H/T under the scoped limit on all gens).
    pipe_bytes = 16 * T * TB * Hp                       # E + out, double-buffered
    weight_bytes = 2 * Hp * Hp * 2 + 2 * 8 * Hp * 4     # bf16 W_hh^T + 1/tau
    scratch_bytes = 2 * TB * Hp * 4
    vmem_limit = int(min(max(pipe_bytes + weight_bytes + scratch_bytes
                             + (4 << 20), 16 << 20), 56 << 20))

    kernel = functools.partial(_lnn_rk4_kernel, dt_all)

    th = pl.pallas_call(
        kernel,
        out_shape=jax.ShapeDtypeStruct((n_steps, Bp, Hp), jnp.float32),
        grid_spec=pltpu.PrefetchScalarGridSpec(
            num_scalar_prefetch=0,
            grid=(NB, NT),                      # (batch blocks, time blocks)
            in_specs=[
                pl.BlockSpec((T, TB, Hp), lambda b, t: (t, b, 0)),    # E
                # W_hh^T / 1/tau: constant index_map -> DMA'd once, stays resident.
                pl.BlockSpec((Hp, Hp), lambda b, t: (0, 0)),          # W_hh^T
                pl.BlockSpec((1, Hp), lambda b, t: (0, 0)),           # 1/tau
            ],
            out_specs=pl.BlockSpec((T, TB, Hp), lambda b, t: (t, b, 0)),
            scratch_shapes=[pltpu.VMEM((TB, Hp), jnp.float32),   # h
                            pltpu.VMEM((TB, Hp), jnp.float32)],  # tanh(h)
        ),
        compiler_params=pltpu.CompilerParams(
            dimension_semantics=("parallel", "arbitrary"),
            vmem_limit_bytes=vmem_limit),
    )(e_pad, w_hh_t, inv_tau)

    th = th[:, :B, :H]                                           # (S-1, B, H)
    # --- hoisted output Linear: one big (S*B,H)@(H,O) matmul -----------------
    out_rest = jnp.einsum("sbh,oh->bso", th, w_out) + b_out      # (B, S-1, O)
    return jnp.concatenate([out0, out_rest], axis=1)             # (B, S, O)


# ---------------------------------------------------------------------------
# Pure-JAX reference (same math, all f32/HIGHEST) for a correctness check.
# ---------------------------------------------------------------------------
def reference_forward(x, params):
    B, S, Din = x.shape
    w_in, b_in = params["w_in"], params["b_in"]
    w_ih, w_hh = params["w_ih"], params["w_hh"]
    bias, tau = params["bias"], params["tau"]
    w_out, b_out = params["w_out"], params["b_out"]
    H = w_in.shape[0]
    h = jnp.zeros((B, H), jnp.float32)
    time_steps = jnp.linspace(0.0, 1.0, S)
    outs = []
    for t in range(S):
        input_t = jnp.dot(x[:, t, :], w_in.T, precision=_HIGHEST) + b_in
        dt = time_steps[t] if t == 0 else time_steps[t] - time_steps[t - 1]
        input_eff = jnp.dot(input_t, w_ih.T, precision=_HIGHEST)

        def dhdt(hh):
            return (-hh + jnp.dot(jnp.tanh(hh), w_hh.T, precision=_HIGHEST)
                    + input_eff + bias) / tau

        k1 = dhdt(h)
        k2 = dhdt(h + 0.5 * dt * k1)
        k3 = dhdt(h + 0.5 * dt * k2)
        k4 = dhdt(h + dt * k3)
        h = h + (dt / 6.0) * (k1 + 2.0 * k2 + 2.0 * k3 + k4)
        outs.append(jnp.dot(jnp.tanh(h), w_out.T, precision=_HIGHEST) + b_out)
    return jnp.stack(outs, axis=1)


# ---------------------------------------------------------------------------
def make_params(key, input_size, hidden_size, output_size):
    ks = jax.random.split(key, 6)
    return {
        # nn.Linear(input_size, hidden_size)
        "w_in": (jax.random.normal(ks[0], (hidden_size, input_size), jnp.float32)
                 * 0.1),
        "b_in": jax.random.normal(ks[1], (hidden_size,), jnp.float32) * 0.1,
        # LiquidODEFunc
        "w_hh": (jax.random.normal(ks[2], (hidden_size, hidden_size), jnp.float32)
                 * 0.01),
        "w_ih": (jax.random.normal(ks[3], (hidden_size, hidden_size), jnp.float32)
                 * 0.01),
        "bias": jnp.zeros((hidden_size,), jnp.float32),
        "tau": jnp.ones((hidden_size,), jnp.float32),
        # nn.Linear(hidden_size, output_size)
        "w_out": (jax.random.normal(ks[4], (output_size, hidden_size), jnp.float32)
                  * 0.1),
        "b_out": jax.random.normal(ks[5], (output_size,), jnp.float32) * 0.1,
    }


if __name__ == "__main__":
    batch, seq, input_size, hidden_size, output_size = 2, 8, 16, 32, 1

    key = jax.random.PRNGKey(0)
    k_x, k_p = jax.random.split(key)
    x = jax.random.normal(k_x, (batch, seq, input_size), jnp.float32)
    params = make_params(k_p, input_size, hidden_size, output_size)

    out = liquid_neural_network_forward(x, params)
    out = jax.block_until_ready(out)

    ref = reference_forward(x, params)
    assert out.shape == (batch, seq, output_size)
    # Tolerance loosened vs the f32 reference: the recurrent matmul uses bf16
    # MXU operands and the hoisted einsums use default matmul precision.
    np.testing.assert_allclose(np.asarray(out), np.asarray(ref),
                               rtol=2e-2, atol=5e-3)
    print("KERNEL_OK")
</pallas_src>

<mosaic_0001>
module attributes {stable_mosaic.version = 11 : i64} {
  func.func @_lnn_rk4_kernel(%arg0: i32, %arg1: i32, %arg2: memref<7x8x128xf32, #tpu.memory_space<vmem>>, %arg3: memref<128x128xbf16, #tpu.memory_space<vmem>>, %arg4: memref<1x128xf32, #tpu.memory_space<vmem>>, %arg5: memref<7x8x128xf32, #tpu.memory_space<vmem>>, %arg6: memref<8x128xf32, #tpu.memory_space<vmem>>, %arg7: memref<8x128xf32, #tpu.memory_space<vmem>>) attributes {dimension_semantics = [#tpu.dimension_semantics<parallel>, #tpu.dimension_semantics<arbitrary>], iteration_bounds = array<i64: 1, 1>, scalar_prefetch = 0 : i64, scratch_operands = 2 : i64, tpu.core_type = #tpu.core_type<tc>, window_params = [{transform_indices = @transform_0, window_bounds = array<i64: 7, 8, 128>}, {pipeline_mode = #tpu.pipeline_mode<synchronous>, transform_indices = @transform_1, window_bounds = array<i64: 128, 128>}, {pipeline_mode = #tpu.pipeline_mode<synchronous>, transform_indices = @transform_2, window_bounds = array<i64: 1, 128>}, {transform_indices = @transform_3, window_bounds = array<i64: 7, 8, 128>}]} {
    %c0_i32 = arith.constant 0 : i32
    %0 = arith.cmpi eq, %arg1, %c0_i32 : i32
    %1 = arith.extui %0 : i1 to i32
    %c0_i32_0 = arith.constant 0 : i32
    %2 = arith.cmpi ne, %1, %c0_i32_0 : i32
    scf.if %2 {
      %cst_72 = arith.constant 0.000000e+00 : f32
      %401 = vector.broadcast %cst_72 : f32 to vector<8x128xf32>
      %c0_73 = arith.constant 0 : index
      %c0_74 = arith.constant 0 : index
      %402 = vector.load %arg6[%c0_73, %c0_74] : memref<8x128xf32, #tpu.memory_space<vmem>>, vector<8x128xf32>
      tpu.vector_store %arg6[%c0_73, %c0_74], %401 {strides = array<i32>} : memref<8x128xf32, #tpu.memory_space<vmem>>, vector<8x128xf32>,
      %cst_75 = arith.constant 0.000000e+00 : f32
      %403 = vector.broadcast %cst_75 : f32 to vector<8x128xf32>
      %c0_76 = arith.constant 0 : index
      %c0_77 = arith.constant 0 : index
      %404 = vector.load %arg7[%c0_76, %c0_77] : memref<8x128xf32, #tpu.memory_space<vmem>>, vector<8x128xf32>
      tpu.vector_store %arg7[%c0_76, %c0_77], %403 {strides = array<i32>} : memref<8x128xf32, #tpu.memory_space<vmem>>, vector<8x128xf32>,
    } else {
    }
    %c0 = arith.constant 0 : index
    %c0_1 = arith.constant 0 : index
    %3 = vector.load %arg3[%c0, %c0_1] : memref<128x128xbf16, #tpu.memory_space<vmem>>, vector<128x128xbf16>
    %c0_2 = arith.constant 0 : index
    %c0_3 = arith.constant 0 : index
    %4 = vector.load %arg4[%c0_2, %c0_3] : memref<1x128xf32, #tpu.memory_space<vmem>>, vector<1x128xf32>
    %c0_4 = arith.constant 0 : index
    %c0_5 = arith.constant 0 : index
    %5 = vector.load %arg6[%c0_4, %c0_5] : memref<8x128xf32, #tpu.memory_space<vmem>>, vector<8x128xf32>
    %c0_6 = arith.constant 0 : index
    %c0_7 = arith.constant 0 : index
    %6 = vector.load %arg7[%c0_6, %c0_7] : memref<8x128xf32, #tpu.memory_space<vmem>>, vector<8x128xf32>
    %cst = arith.constant 0.0238095243 : f32
    %cst_8 = arith.constant 0.0714285746 : f32
    %cst_9 = arith.constant 0.0476190485 : f32
    %cst_10 = arith.constant 0.142857149 : f32
    %c0_i32_11 = arith.constant 0 : i32
    %7 = arith.index_cast %c0_i32_11 : i32 to index
    %c0_12 = arith.constant 0 : index
    %c0_13 = arith.constant 0 : index
    %8 = vector.load %arg2[%7, %c0_12, %c0_13] : memref<7x8x128xf32, #tpu.memory_space<vmem>>, vector<1x8x128xf32>
    %9 = vector.shape_cast %8 : vector<1x8x128xf32> to vector<8x128xf32>
    %10 = arith.truncf %6 : vector<8x128xf32> to vector<8x128xbf16>
    %cst_14 = arith.constant dense<0.000000e+00> : vector<8x128xf32>
    %11 = tpu.matmul %10, %3, %cst_14 {dimension_numbers = #tpu.dot_dimension_numbers<[1], [0], [0], [1], [0, 0, 1, 1], [], []>} : vector<8x128xbf16>, vector<128x128xbf16>, vector<8x128xf32> -> vector<8x128xf32>
    %12 = arith.subf %11, %5 : vector<8x128xf32>
    %13 = arith.addf %12, %9 : vector<8x128xf32>
    %14 = vector.broadcast %4 : vector<1x128xf32> to vector<8x128xf32>
    %15 = arith.mulf %13, %14 : vector<8x128xf32>
    %16 = vector.broadcast %cst : f32 to vector<8x128xf32>
    %17 = arith.mulf %16, %15 : vector<8x128xf32>
    %18 = arith.addf %5, %17 : vector<8x128xf32>
    %19 = vector.broadcast %cst_8 : f32 to vector<8x128xf32>
    %20 = arith.mulf %19, %15 : vector<8x128xf32>
    %21 = arith.addf %5, %20 : vector<8x128xf32>
    %22 = math.tanh %21 : vector<8x128xf32>
    %23 = arith.truncf %22 : vector<8x128xf32> to vector<8x128xbf16>
    %cst_15 = arith.constant dense<0.000000e+00> : vector<8x128xf32>
    %24 = tpu.matmul %23, %3, %cst_15 {dimension_numbers = #tpu.dot_dimension_numbers<[1], [0], [0], [1], [0, 0, 1, 1], [], []>} : vector<8x128xbf16>, vector<128x128xbf16>, vector<8x128xf32> -> vector<8x128xf32>
    %25 = arith.subf %24, %21 : vector<8x128xf32>
    %26 = arith.addf %25, %9 : vector<8x128xf32>
    %27 = vector.broadcast %4 : vector<1x128xf32> to vector<8x128xf32>
    %28 = arith.mulf %26, %27 : vector<8x128xf32>
    %29 = vector.broadcast %cst_9 : f32 to vector<8x128xf32>
    %30 = arith.mulf %29, %28 : vector<8x128xf32>
    %31 = arith.addf %18, %30 : vector<8x128xf32>
    %32 = vector.broadcast %cst_8 : f32 to vector<8x128xf32>
    %33 = arith.mulf %32, %28 : vector<8x128xf32>
    %34 = arith.addf %5, %33 : vector<8x128xf32>
    %35 = math.tanh %34 : vector<8x128xf32>
    %36 = arith.truncf %35 : vector<8x128xf32> to vector<8x128xbf16>
    %cst_16 = arith.constant dense<0.000000e+00> : vector<8x128xf32>
    %37 = tpu.matmul %36, %3, %cst_16 {dimension_numbers = #tpu.dot_dimension_numbers<[1], [0], [0], [1], [0, 0, 1, 1], [], []>} : vector<8x128xbf16>, vector<128x128xbf16>, vector<8x128xf32> -> vector<8x128xf32>
    %38 = arith.subf %37, %34 : vector<8x128xf32>
    %39 = arith.addf %38, %9 : vector<8x128xf32>
    %40 = vector.broadcast %4 : vector<1x128xf32> to vector<8x128xf32>
    %41 = arith.mulf %39, %40 : vector<8x128xf32>
    %42 = vector.broadcast %cst_9 : f32 to vector<8x128xf32>
    %43 = arith.mulf %42, %41 : vector<8x128xf32>
    %44 = arith.addf %31, %43 : vector<8x128xf32>
    %45 = vector.broadcast %cst_10 : f32 to vector<8x128xf32>
    %46 = arith.mulf %45, %41 : vector<8x128xf32>
    %47 = arith.addf %5, %46 : vector<8x128xf32>
    %48 = math.tanh %47 : vector<8x128xf32>
    %49 = arith.truncf %48 : vector<8x128xf32> to vector<8x128xbf16>
    %cst_17 = arith.constant dense<0.000000e+00> : vector<8x128xf32>
    %50 = tpu.matmul %49, %3, %cst_17 {dimension_numbers = #tpu.dot_dimension_numbers<[1], [0], [0], [1], [0, 0, 1, 1], [], []>} : vector<8x128xbf16>, vector<128x128xbf16>, vector<8x128xf32> -> vector<8x128xf32>
    %51 = arith.subf %50, %47 : vector<8x128xf32>
    %52 = arith.addf %51, %9 : vector<8x128xf32>
    %53 = vector.broadcast %4 : vector<1x128xf32> to vector<8x128xf32>
    %54 = arith.mulf %52, %53 : vector<8x128xf32>
    %55 = vector.broadcast %cst : f32 to vector<8x128xf32>
    %56 = arith.mulf %55, %54 : vector<8x128xf32>
    %57 = arith.addf %44, %56 : vector<8x128xf32>
    %58 = math.tanh %57 : vector<8x128xf32>
    %59 = arith.index_cast %c0_i32_11 : i32 to index
    %c0_18 = arith.constant 0 : index
    %c0_19 = arith.constant 0 : index
    %60 = vector.load %arg5[%59, %c0_18, %c0_19] : memref<7x8x128xf32, #tpu.memory_space<vmem>>, vector<1x8x128xf32>
    %61 = vector.shape_cast %60 : vector<1x8x128xf32> to vector<8x128xf32>
    %62 = vector.shape_cast %58 : vector<8x128xf32> to vector<1x8x128xf32>
    tpu.vector_store %arg5[%59, %c0_18, %c0_19], %62 {strides = array<i32>} : memref<7x8x128xf32, #tpu.memory_space<vmem>>, vector<1x8x128xf32>,
    %c1_i32 = arith.constant 1 : i32
    %63 = arith.index_cast %c1_i32 : i32 to index
    %c0_20 = arith.constant 0 : index
    %c0_21 = arith.constant 0 : index
    %64 = vector.load %arg2[%63, %c0_20, %c0_21] : memref<7x8x128xf32, #tpu.memory_space<vmem>>, vector<1x8x128xf32>
    %65 = vector.shape_cast %64 : vector<1x8x128xf32> to vector<8x128xf32>
    %66 = arith.truncf %58 : vector<8x128xf32> to vector<8x128xbf16>
    %cst_22 = arith.constant dense<0.000000e+00> : vector<8x128xf32>
    %67 = tpu.matmul %66, %3, %cst_22 {dimension_numbers = #tpu.dot_dimension_numbers<[1], [0], [0], [1], [0, 0, 1, 1], [], []>} : vector<8x128xbf16>, vector<128x128xbf16>, vector<8x128xf32> -> vector<8x128xf32>
    %68 = arith.subf %67, %57 : vector<8x128xf32>
    %69 = arith.addf %68, %65 : vector<8x128xf32>
    %70 = vector.broadcast %4 : vector<1x128xf32> to vector<8x128xf32>
    %71 = arith.mulf %69, %70 : vector<8x128xf32>
    %72 = vector.broadcast %cst : f32 to vector<8x128xf32>
    %73 = arith.mulf %72, %71 : vector<8x128xf32>
    %74 = arith.addf %57, %73 : vector<8x128xf32>
    %75 = vector.broadcast %cst_8 : f32 to vector<8x128xf32>
    %76 = arith.mulf %75, %71 : vector<8x128xf32>
    %77 = arith.addf %57, %76 : vector<8x128xf32>
    %78 = math.tanh %77 : vector<8x128xf32>
    %79 = arith.truncf %78 : vector<8x128xf32> to vector<8x128xbf16>
    %cst_23 = arith.constant dense<0.000000e+00> : vector<8x128xf32>
    %80 = tpu.matmul %79, %3, %cst_23 {dimension_numbers = #tpu.dot_dimension_numbers<[1], [0], [0], [1], [0, 0, 1, 1], [], []>} : vector<8x128xbf16>, vector<128x128xbf16>, vector<8x128xf32> -> vector<8x128xf32>
    %81 = arith.subf %80, %77 : vector<8x128xf32>
    %82 = arith.addf %81, %65 : vector<8x128xf32>
    %83 = vector.broadcast %4 : vector<1x128xf32> to vector<8x128xf32>
    %84 = arith.mulf %82, %83 : vector<8x128xf32>
    %85 = vector.broadcast %cst_9 : f32 to vector<8x128xf32>
    %86 = arith.mulf %85, %84 : vector<8x128xf32>
    %87 = arith.addf %74, %86 : vector<8x128xf32>
    %88 = vector.broadcast %cst_8 : f32 to vector<8x128xf32>
    %89 = arith.mulf %88, %84 : vector<8x128xf32>
    %90 = arith.addf %57, %89 : vector<8x128xf32>
    %91 = math.tanh %90 : vector<8x128xf32>
    %92 = arith.truncf %91 : vector<8x128xf32> to vector<8x128xbf16>
    %cst_24 = arith.constant dense<0.000000e+00> : vector<8x128xf32>
    %93 = tpu.matmul %92, %3, %cst_24 {dimension_numbers = #tpu.dot_dimension_numbers<[1], [0], [0], [1], [0, 0, 1, 1], [], []>} : vector<8x128xbf16>, vector<128x128xbf16>, vector<8x128xf32> -> vector<8x128xf32>
    %94 = arith.subf %93, %90 : vector<8x128xf32>
    %95 = arith.addf %94, %65 : vector<8x128xf32>
    %96 = vector.broadcast %4 : vector<1x128xf32> to vector<8x128xf32>
    %97 = arith.mulf %95, %96 : vector<8x128xf32>
    %98 = vector.broadcast %cst_9 : f32 to vector<8x128xf32>
    %99 = arith.mulf %98, %97 : vector<8x128xf32>
    %100 = arith.addf %87, %99 : vector<8x128xf32>
    %101 = vector.broadcast %cst_10 : f32 to vector<8x128xf32>
    %102 = arith.mulf %101, %97 : vector<8x128xf32>
    %103 = arith.addf %57, %102 : vector<8x128xf32>
    %104 = math.tanh %103 : vector<8x128xf32>
    %105 = arith.truncf %104 : vector<8x128xf32> to vector<8x128xbf16>
    %cst_25 = arith.constant dense<0.000000e+00> : vector<8x128xf32>
    %106 = tpu.matmul %105, %3, %cst_25 {dimension_numbers = #tpu.dot_dimension_numbers<[1], [0], [0], [1], [0, 0, 1, 1], [], []>} : vector<8x128xbf16>, vector<128x128xbf16>, vector<8x128xf32> -> vector<8x128xf32>
    %107 = arith.subf %106, %103 : vector<8x128xf32>
    %108 = arith.addf %107, %65 : vector<8x128xf32>
    %109 = vector.broadcast %4 : vector<1x128xf32> to vector<8x128xf32>
    %110 = arith.mulf %108, %109 : vector<8x128xf32>
    %111 = vector.broadcast %cst : f32 to vector<8x128xf32>
    %112 = arith.mulf %111, %110 : vector<8x128xf32>
    %113 = arith.addf %100, %112 : vector<8x128xf32>
    %114 = math.tanh %113 : vector<8x128xf32>
    %115 = arith.index_cast %c1_i32 : i32 to index
    %c0_26 = arith.constant 0 : index
    %c0_27 = arith.constant 0 : index
    %116 = vector.load %arg5[%115, %c0_26, %c0_27] : memref<7x8x128xf32, #tpu.memory_space<vmem>>, vector<1x8x128xf32>
    %117 = vector.shape_cast %116 : vector<1x8x128xf32> to vector<8x128xf32>
    %118 = vector.shape_cast %114 : vector<8x128xf32> to vector<1x8x128xf32>
    tpu.vector_store %arg5[%115, %c0_26, %c0_27], %118 {strides = array<i32>} : memref<7x8x128xf32, #tpu.memory_space<vmem>>, vector<1x8x128xf32>,
    %c2_i32 = arith.constant 2 : i32
    %119 = arith.index_cast %c2_i32 : i32 to index
    %c0_28 = arith.constant 0 : index
    %c0_29 = arith.constant 0 : index
    %120 = vector.load %arg2[%119, %c0_28, %c0_29] : memref<7x8x128xf32, #tpu.memory_space<vmem>>, vector<1x8x128xf32>
    %121 = vector.shape_cast %120 : vector<1x8x128xf32> to vector<8x128xf32>
    %122 = arith.truncf %114 : vector<8x128xf32> to vector<8x128xbf16>
    %cst_30 = arith.constant dense<0.000000e+00> : vector<8x128xf32>
    %123 = tpu.matmul %122, %3, %cst_30 {dimension_numbers = #tpu.dot_dimension_numbers<[1], [0], [0], [1], [0, 0, 1, 1], [], []>} : vector<8x128xbf16>, vector<128x128xbf16>, vector<8x128xf32> -> vector<8x128xf32>
    %124 = arith.subf %123, %113 : vector<8x128xf32>
    %125 = arith.addf %124, %121 : vector<8x128xf32>
    %126 = vector.broadcast %4 : vector<1x128xf32> to vector<8x128xf32>
    %127 = arith.mulf %125, %126 : vector<8x128xf32>
    %128 = vector.broadcast %cst : f32 to vector<8x128xf32>
    %129 = arith.mulf %128, %127 : vector<8x128xf32>
    %130 = arith.addf %113, %129 : vector<8x128xf32>
    %131 = vector.broadcast %cst_8 : f32 to vector<8x128xf32>
    %132 = arith.mulf %131, %127 : vector<8x128xf32>
    %133 = arith.addf %113, %132 : vector<8x128xf32>
    %134 = math.tanh %133 : vector<8x128xf32>
    %135 = arith.truncf %134 : vector<8x128xf32> to vector<8x128xbf16>
    %cst_31 = arith.constant dense<0.000000e+00> : vector<8x128xf32>
    %136 = tpu.matmul %135, %3, %cst_31 {dimension_numbers = #tpu.dot_dimension_numbers<[1], [0], [0], [1], [0, 0, 1, 1], [], []>} : vector<8x128xbf16>, vector<128x128xbf16>, vector<8x128xf32> -> vector<8x128xf32>
    %137 = arith.subf %136, %133 : vector<8x128xf32>
    %138 = arith.addf %137, %121 : vector<8x128xf32>
    %139 = vector.broadcast %4 : vector<1x128xf32> to vector<8x128xf32>
    %140 = arith.mulf %138, %139 : vector<8x128xf32>
    %141 = vector.broadcast %cst_9 : f32 to vector<8x128xf32>
    %142 = arith.mulf %141, %140 : vector<8x128xf32>
    %143 = arith.addf %130, %142 : vector<8x128xf32>
    %144 = vector.broadcast %cst_8 : f32 to vector<8x128xf32>
    %145 = arith.mulf %144, %140 : vector<8x128xf32>
    %146 = arith.addf %113, %145 : vector<8x128xf32>
    %147 = math.tanh %146 : vector<8x128xf32>
    %148 = arith.truncf %147 : vector<8x128xf32> to vector<8x128xbf16>
    %cst_32 = arith.constant dense<0.000000e+00> : vector<8x128xf32>
    %149 = tpu.matmul %148, %3, %cst_32 {dimension_numbers = #tpu.dot_dimension_numbers<[1], [0], [0], [1], [0, 0, 1, 1], [], []>} : vector<8x128xbf16>, vector<128x128xbf16>, vector<8x128xf32> -> vector<8x128xf32>
    %150 = arith.subf %149, %146 : vector<8x128xf32>
    %151 = arith.addf %150, %121 : vector<8x128xf32>
    %152 = vector.broadcast %4 : vector<1x128xf32> to vector<8x128xf32>
    %153 = arith.mulf %151, %152 : vector<8x128xf32>
    %154 = vector.broadcast %cst_9 : f32 to vector<8x128xf32>
    %155 = arith.mulf %154, %153 : vector<8x128xf32>
    %156 = arith.addf %143, %155 : vector<8x128xf32>
    %157 = vector.broadcast %cst_10 : f32 to vector<8x128xf32>
    %158 = arith.mulf %157, %153 : vector<8x128xf32>
    %159 = arith.addf %113, %158 : vector<8x128xf32>
    %160 = math.tanh %159 : vector<8x128xf32>
    %161 = arith.truncf %160 : vector<8x128xf32> to vector<8x128xbf16>
    %cst_33 = arith.constant dense<0.000000e+00> : vector<8x128xf32>
    %162 = tpu.matmul %161, %3, %cst_33 {dimension_numbers = #tpu.dot_dimension_numbers<[1], [0], [0], [1], [0, 0, 1, 1], [], []>} : vector<8x128xbf16>, vector<128x128xbf16>, vector<8x128xf32> -> vector<8x128xf32>
    %163 = arith.subf %162, %159 : vector<8x128xf32>
    %164 = arith.addf %163, %121 : vector<8x128xf32>
    %165 = vector.broadcast %4 : vector<1x128xf32> to vector<8x128xf32>
    %166 = arith.mulf %164, %165 : vector<8x128xf32>
    %167 = vector.broadcast %cst : f32 to vector<8x128xf32>
    %168 = arith.mulf %167, %166 : vector<8x128xf32>
    %169 = arith.addf %156, %168 : vector<8x128xf32>
    %170 = math.tanh %169 : vector<8x128xf32>
    %171 = arith.index_cast %c2_i32 : i32 to index
    %c0_34 = arith.constant 0 : index
    %c0_35 = arith.constant 0 : index
    %172 = vector.load %arg5[%171, %c0_34, %c0_35] : memref<7x8x128xf32, #tpu.memory_space<vmem>>, vector<1x8x128xf32>
    %173 = vector.shape_cast %172 : vector<1x8x128xf32> to vector<8x128xf32>
    %174 = vector.shape_cast %170 : vector<8x128xf32> to vector<1x8x128xf32>
    tpu.vector_store %arg5[%171, %c0_34, %c0_35], %174 {strides = array<i32>} : memref<7x8x128xf32, #tpu.memory_space<vmem>>, vector<1x8x128xf32>,
    %c3_i32 = arith.constant 3 : i32
    %175 = arith.index_cast %c3_i32 : i32 to index
    %c0_36 = arith.constant 0 : index
    %c0_37 = arith.constant 0 : index
    %176 = vector.load %arg2[%175, %c0_36, %c0_37] : memref<7x8x128xf32, #tpu.memory_space<vmem>>, vector<1x8x128xf32>
    %177 = vector.shape_cast %176 : vector<1x8x128xf32> to vector<8x128xf32>
    %178 = arith.truncf %170 : vector<8x128xf32> to vector<8x128xbf16>
    %cst_38 = arith.constant dense<0.000000e+00> : vector<8x128xf32>
    %179 = tpu.matmul %178, %3, %cst_38 {dimension_numbers = #tpu.dot_dimension_numbers<[1], [0], [0], [1], [0, 0, 1, 1], [], []>} : vector<8x128xbf16>, vector<128x128xbf16>, vector<8x128xf32> -> vector<8x128xf32>
    %180 = arith.subf %179, %169 : vector<8x128xf32>
    %181 = arith.addf %180, %177 : vector<8x128xf32>
    %182 = vector.broadcast %4 : vector<1x128xf32> to vector<8x128xf32>
    %183 = arith.mulf %181, %182 : vector<8x128xf32>
    %184 = vector.broadcast %cst : f32 to vector<8x128xf32>
    %185 = arith.mulf %184, %183 : vector<8x128xf32>
    %186 = arith.addf %169, %185 : vector<8x128xf32>
    %187 = vector.broadcast %cst_8 : f32 to vector<8x128xf32>
    %188 = arith.mulf %187, %183 : vector<8x128xf32>
    %189 = arith.addf %169, %188 : vector<8x128xf32>
    %190 = math.tanh %189 : vector<8x128xf32>
    %191 = arith.truncf %190 : vector<8x128xf32> to vector<8x128xbf16>
    %cst_39 = arith.constant dense<0.000000e+00> : vector<8x128xf32>
    %192 = tpu.matmul %191, %3, %cst_39 {dimension_numbers = #tpu.dot_dimension_numbers<[1], [0], [0], [1], [0, 0, 1, 1], [], []>} : vector<8x128xbf16>, vector<128x128xbf16>, vector<8x128xf32> -> vector<8x128xf32>
    %193 = arith.subf %192, %189 : vector<8x128xf32>
    %194 = arith.addf %193, %177 : vector<8x128xf32>
    %195 = vector.broadcast %4 : vector<1x128xf32> to vector<8x128xf32>
    %196 = arith.mulf %194, %195 : vector<8x128xf32>
    %197 = vector.broadcast %cst_9 : f32 to vector<8x128xf32>
    %198 = arith.mulf %197, %196 : vector<8x128xf32>
    %199 = arith.addf %186, %198 : vector<8x128xf32>
    %200 = vector.broadcast %cst_8 : f32 to vector<8x128xf32>
    %201 = arith.mulf %200, %196 : vector<8x128xf32>
    %202 = arith.addf %169, %201 : vector<8x128xf32>
    %203 = math.tanh %202 : vector<8x128xf32>
    %204 = arith.truncf %203 : vector<8x128xf32> to vector<8x128xbf16>
    %cst_40 = arith.constant dense<0.000000e+00> : vector<8x128xf32>
    %205 = tpu.matmul %204, %3, %cst_40 {dimension_numbers = #tpu.dot_dimension_numbers<[1], [0], [0], [1], [0, 0, 1, 1], [], []>} : vector<8x128xbf16>, vector<128x128xbf16>, vector<8x128xf32> -> vector<8x128xf32>
    %206 = arith.subf %205, %202 : vector<8x128xf32>
    %207 = arith.addf %206, %177 : vector<8x128xf32>
    %208 = vector.broadcast %4 : vector<1x128xf32> to vector<8x128xf32>
    %209 = arith.mulf %207, %208 : vector<8x128xf32>
    %210 = vector.broadcast %cst_9 : f32 to vector<8x128xf32>
    %211 = arith.mulf %210, %209 : vector<8x128xf32>
    %212 = arith.addf %199, %211 : vector<8x128xf32>
    %213 = vector.broadcast %cst_10 : f32 to vector<8x128xf32>
    %214 = arith.mulf %213, %209 : vector<8x128xf32>
    %215 = arith.addf %169, %214 : vector<8x128xf32>
    %216 = math.tanh %215 : vector<8x128xf32>
    %217 = arith.truncf %216 : vector<8x128xf32> to vector<8x128xbf16>
    %cst_41 = arith.constant dense<0.000000e+00> : vector<8x128xf32>
    %218 = tpu.matmul %217, %3, %cst_41 {dimension_numbers = #tpu.dot_dimension_numbers<[1], [0], [0], [1], [0, 0, 1, 1], [], []>} : vector<8x128xbf16>, vector<128x128xbf16>, vector<8x128xf32> -> vector<8x128xf32>
    %219 = arith.subf %218, %215 : vector<8x128xf32>
    %220 = arith.addf %219, %177 : vector<8x128xf32>
    %221 = vector.broadcast %4 : vector<1x128xf32> to vector<8x128xf32>
    %222 = arith.mulf %220, %221 : vector<8x128xf32>
    %223 = vector.broadcast %cst : f32 to vector<8x128xf32>
    %224 = arith.mulf %223, %222 : vector<8x128xf32>
    %225 = arith.addf %212, %224 : vector<8x128xf32>
    %226 = math.tanh %225 : vector<8x128xf32>
    %227 = arith.index_cast %c3_i32 : i32 to index
    %c0_42 = arith.constant 0 : index
    %c0_43 = arith.constant 0 : index
    %228 = vector.load %arg5[%227, %c0_42, %c0_43] : memref<7x8x128xf32, #tpu.memory_space<vmem>>, vector<1x8x128xf32>
    %229 = vector.shape_cast %228 : vector<1x8x128xf32> to vector<8x128xf32>
    %230 = vector.shape_cast %226 : vector<8x128xf32> to vector<1x8x128xf32>
    tpu.vector_store %arg5[%227, %c0_42, %c0_43], %230 {strides = array<i32>} : memref<7x8x128xf32, #tpu.memory_space<vmem>>, vector<1x8x128xf32>,
    %c4_i32 = arith.constant 4 : i32
    %231 = arith.index_cast %c4_i32 : i32 to index
    %c0_44 = arith.constant 0 : index
    %c0_45 = arith.constant 0 : index
    %232 = vector.load %arg2[%231, %c0_44, %c0_45] : memref<7x8x128xf32, #tpu.memory_space<vmem>>, vector<1x8x128xf32>
    %233 = vector.shape_cast %232 : vector<1x8x128xf32> to vector<8x128xf32>
    %234 = arith.truncf %226 : vector<8x128xf32> to vector<8x128xbf16>
    %cst_46 = arith.constant dense<0.000000e+00> : vector<8x128xf32>
    %235 = tpu.matmul %234, %3, %cst_46 {dimension_numbers = #tpu.dot_dimension_numbers<[1], [0], [0], [1], [0, 0, 1, 1], [], []>} : vector<8x128xbf16>, vector<128x128xbf16>, vector<8x128xf32> -> vector<8x128xf32>
    %236 = arith.subf %235, %225 : vector<8x128xf32>
    %237 = arith.addf %236, %233 : vector<8x128xf32>
    %238 = vector.broadcast %4 : vector<1x128xf32> to vector<8x128xf32>
    %239 = arith.mulf %237, %238 : vector<8x128xf32>
    %240 = vector.broadcast %cst : f32 to vector<8x128xf32>
    %241 = arith.mulf %240, %239 : vector<8x128xf32>
    %242 = arith.addf %225, %241 : vector<8x128xf32>
    %243 = vector.broadcast %cst_8 : f32 to vector<8x128xf32>
    %244 = arith.mulf %243, %239 : vector<8x128xf32>
    %245 = arith.addf %225, %244 : vector<8x128xf32>
    %246 = math.tanh %245 : vector<8x128xf32>
    %247 = arith.truncf %246 : vector<8x128xf32> to vector<8x128xbf16>
    %cst_47 = arith.constant dense<0.000000e+00> : vector<8x128xf32>
    %248 = tpu.matmul %247, %3, %cst_47 {dimension_numbers = #tpu.dot_dimension_numbers<[1], [0], [0], [1], [0, 0, 1, 1], [], []>} : vector<8x128xbf16>, vector<128x128xbf16>, vector<8x128xf32> -> vector<8x128xf32>
    %249 = arith.subf %248, %245 : vector<8x128xf32>
    %250 = arith.addf %249, %233 : vector<8x128xf32>
    %251 = vector.broadcast %4 : vector<1x128xf32> to vector<8x128xf32>
    %252 = arith.mulf %250, %251 : vector<8x128xf32>
    %253 = vector.broadcast %cst_9 : f32 to vector<8x128xf32>
    %254 = arith.mulf %253, %252 : vector<8x128xf32>
    %255 = arith.addf %242, %254 : vector<8x128xf32>
    %256 = vector.broadcast %cst_8 : f32 to vector<8x128xf32>
    %257 = arith.mulf %256, %252 : vector<8x128xf32>
    %258 = arith.addf %225, %257 : vector<8x128xf32>
    %259 = math.tanh %258 : vector<8x128xf32>
    %260 = arith.truncf %259 : vector<8x128xf32> to vector<8x128xbf16>
    %cst_48 = arith.constant dense<0.000000e+00> : vector<8x128xf32>
    %261 = tpu.matmul %260, %3, %cst_48 {dimension_numbers = #tpu.dot_dimension_numbers<[1], [0], [0], [1], [0, 0, 1, 1], [], []>} : vector<8x128xbf16>, vector<128x128xbf16>, vector<8x128xf32> -> vector<8x128xf32>
    %262 = arith.subf %261, %258 : vector<8x128xf32>
    %263 = arith.addf %262, %233 : vector<8x128xf32>
    %264 = vector.broadcast %4 : vector<1x128xf32> to vector<8x128xf32>
    %265 = arith.mulf %263, %264 : vector<8x128xf32>
    %266 = vector.broadcast %cst_9 : f32 to vector<8x128xf32>
    %267 = arith.mulf %266, %265 : vector<8x128xf32>
    %268 = arith.addf %255, %267 : vector<8x128xf32>
    %269 = vector.broadcast %cst_10 : f32 to vector<8x128xf32>
    %270 = arith.mulf %269, %265 : vector<8x128xf32>
    %271 = arith.addf %225, %270 : vector<8x128xf32>
    %272 = math.tanh %271 : vector<8x128xf32>
    %273 = arith.truncf %272 : vector<8x128xf32> to vector<8x128xbf16>
    %cst_49 = arith.constant dense<0.000000e+00> : vector<8x128xf32>
    %274 = tpu.matmul %273, %3, %cst_49 {dimension_numbers = #tpu.dot_dimension_numbers<[1], [0], [0], [1], [0, 0, 1, 1], [], []>} : vector<8x128xbf16>, vector<128x128xbf16>, vector<8x128xf32> -> vector<8x128xf32>
    %275 = arith.subf %274, %271 : vector<8x128xf32>
    %276 = arith.addf %275, %233 : vector<8x128xf32>
    %277 = vector.broadcast %4 : vector<1x128xf32> to vector<8x128xf32>
    %278 = arith.mulf %276, %277 : vector<8x128xf32>
    %279 = vector.broadcast %cst : f32 to vector<8x128xf32>
    %280 = arith.mulf %279, %278 : vector<8x128xf32>
    %281 = arith.addf %268, %280 : vector<8x128xf32>
    %282 = math.tanh %281 : vector<8x128xf32>
    %283 = arith.index_cast %c4_i32 : i32 to index
    %c0_50 = arith.constant 0 : index
    %c0_51 = arith.constant 0 : index
    %284 = vector.load %arg5[%283, %c0_50, %c0_51] : memref<7x8x128xf32, #tpu.memory_space<vmem>>, vector<1x8x128xf32>
    %285 = vector.shape_cast %284 : vector<1x8x128xf32> to vector<8x128xf32>
    %286 = vector.shape_cast %282 : vector<8x128xf32> to vector<1x8x128xf32>
    tpu.vector_store %arg5[%283, %c0_50, %c0_51], %286 {strides = array<i32>} : memref<7x8x128xf32, #tpu.memory_space<vmem>>, vector<1x8x128xf32>,
    %c5_i32 = arith.constant 5 : i32
    %287 = arith.index_cast %c5_i32 : i32 to index
    %c0_52 = arith.constant 0 : index
    %c0_53 = arith.constant 0 : index
    %288 = vector.load %arg2[%287, %c0_52, %c0_53] : memref<7x8x128xf32, #tpu.memory_space<vmem>>, vector<1x8x128xf32>
    %289 = vector.shape_cast %288 : vector<1x8x128xf32> to vector<8x128xf32>
    %290 = arith.truncf %282 : vector<8x128xf32> to vector<8x128xbf16>
    %cst_54 = arith.constant dense<0.000000e+00> : vector<8x128xf32>
    %291 = tpu.matmul %290, %3, %cst_54 {dimension_numbers = #tpu.dot_dimension_numbers<[1], [0], [0], [1], [0, 0, 1, 1], [], []>} : vector<8x128xbf16>, vector<128x128xbf16>, vector<8x128xf32> -> vector<8x128xf32>
    %292 = arith.subf %291, %281 : vector<8x128xf32>
    %293 = arith.addf %292, %289 : vector<8x128xf32>
    %294 = vector.broadcast %4 : vector<1x128xf32> to vector<8x128xf32>
    %295 = arith.mulf %293, %294 : vector<8x128xf32>
    %296 = vector.broadcast %cst : f32 to vector<8x128xf32>
    %297 = arith.mulf %296, %295 : vector<8x128xf32>
    %298 = arith.addf %281, %297 : vector<8x128xf32>
    %299 = vector.broadcast %cst_8 : f32 to vector<8x128xf32>
    %300 = arith.mulf %299, %295 : vector<8x128xf32>
    %301 = arith.addf %281, %300 : vector<8x128xf32>
    %302 = math.tanh %301 : vector<8x128xf32>
    %303 = arith.truncf %302 : vector<8x128xf32> to vector<8x128xbf16>
    %cst_55 = arith.constant dense<0.000000e+00> : vector<8x128xf32>
    %304 = tpu.matmul %303, %3, %cst_55 {dimension_numbers = #tpu.dot_dimension_numbers<[1], [0], [0], [1], [0, 0, 1, 1], [], []>} : vector<8x128xbf16>, vector<128x128xbf16>, vector<8x128xf32> -> vector<8x128xf32>
    %305 = arith.subf %304, %301 : vector<8x128xf32>
    %306 = arith.addf %305, %289 : vector<8x128xf32>
    %307 = vector.broadcast %4 : vector<1x128xf32> to vector<8x128xf32>
    %308 = arith.mulf %306, %307 : vector<8x128xf32>
    %309 = vector.broadcast %cst_9 : f32 to vector<8x128xf32>
    %310 = arith.mulf %309, %308 : vector<8x128xf32>
    %311 = arith.addf %298, %310 : vector<8x128xf32>
    %312 = vector.broadcast %cst_8 : f32 to vector<8x128xf32>
    %313 = arith.mulf %312, %308 : vector<8x128xf32>
    %314 = arith.addf %281, %313 : vector<8x128xf32>
    %315 = math.tanh %314 : vector<8x128xf32>
    %316 = arith.truncf %315 : vector<8x128xf32> to vector<8x128xbf16>
    %cst_56 = arith.constant dense<0.000000e+00> : vector<8x128xf32>
    %317 = tpu.matmul %316, %3, %cst_56 {dimension_numbers = #tpu.dot_dimension_numbers<[1], [0], [0], [1], [0, 0, 1, 1], [], []>} : vector<8x128xbf16>, vector<128x128xbf16>, vector<8x128xf32> -> vector<8x128xf32>
    %318 = arith.subf %317, %314 : vector<8x128xf32>
    %319 = arith.addf %318, %289 : vector<8x128xf32>
    %320 = vector.broadcast %4 : vector<1x128xf32> to vector<8x128xf32>
    %321 = arith.mulf %319, %320 : vector<8x128xf32>
    %322 = vector.broadcast %cst_9 : f32 to vector<8x128xf32>
    %323 = arith.mulf %322, %321 : vector<8x128xf32>
    %324 = arith.addf %311, %323 : vector<8x128xf32>
    %325 = vector.broadcast %cst_10 : f32 to vector<8x128xf32>
    %326 = arith.mulf %325, %321 : vector<8x128xf32>
    %327 = arith.addf %281, %326 : vector<8x128xf32>
    %328 = math.tanh %327 : vector<8x128xf32>
    %329 = arith.truncf %328 : vector<8x128xf32> to vector<8x128xbf16>
    %cst_57 = arith.constant dense<0.000000e+00> : vector<8x128xf32>
    %330 = tpu.matmul %329, %3, %cst_57 {dimension_numbers = #tpu.dot_dimension_numbers<[1], [0], [0], [1], [0, 0, 1, 1], [], []>} : vector<8x128xbf16>, vector<128x128xbf16>, vector<8x128xf32> -> vector<8x128xf32>
    %331 = arith.subf %330, %327 : vector<8x128xf32>
    %332 = arith.addf %331, %289 : vector<8x128xf32>
    %333 = vector.broadcast %4 : vector<1x128xf32> to vector<8x128xf32>
    %334 = arith.mulf %332, %333 : vector<8x128xf32>
    %335 = vector.broadcast %cst : f32 to vector<8x128xf32>
    %336 = arith.mulf %335, %334 : vector<8x128xf32>
    %337 = arith.addf %324, %336 : vector<8x128xf32>
    %338 = math.tanh %337 : vector<8x128xf32>
    %339 = arith.index_cast %c5_i32 : i32 to index
    %c0_58 = arith.constant 0 : index
    %c0_59 = arith.constant 0 : index
    %340 = vector.load %arg5[%339, %c0_58, %c0_59] : memref<7x8x128xf32, #tpu.memory_space<vmem>>, vector<1x8x128xf32>
    %341 = vector.shape_cast %340 : vector<1x8x128xf32> to vector<8x128xf32>
    %342 = vector.shape_cast %338 : vector<8x128xf32> to vector<1x8x128xf32>
    tpu.vector_store %arg5[%339, %c0_58, %c0_59], %342 {strides = array<i32>} : memref<7x8x128xf32, #tpu.memory_space<vmem>>, vector<1x8x128xf32>,
    %c6_i32 = arith.constant 6 : i32
    %343 = arith.index_cast %c6_i32 : i32 to index
    %c0_60 = arith.constant 0 : index
    %c0_61 = arith.constant 0 : index
    %344 = vector.load %arg2[%343, %c0_60, %c0_61] : memref<7x8x128xf32, #tpu.memory_space<vmem>>, vector<1x8x128xf32>
    %345 = vector.shape_cast %344 : vector<1x8x128xf32> to vector<8x128xf32>
    %346 = arith.truncf %338 : vector<8x128xf32> to vector<8x128xbf16>
    %cst_62 = arith.constant dense<0.000000e+00> : vector<8x128xf32>
    %347 = tpu.matmul %346, %3, %cst_62 {dimension_numbers = #tpu.dot_dimension_numbers<[1], [0], [0], [1], [0, 0, 1, 1], [], []>} : vector<8x128xbf16>, vector<128x128xbf16>, vector<8x128xf32> -> vector<8x128xf32>
    %348 = arith.subf %347, %337 : vector<8x128xf32>
    %349 = arith.addf %348, %345 : vector<8x128xf32>
    %350 = vector.broadcast %4 : vector<1x128xf32> to vector<8x128xf32>
    %351 = arith.mulf %349, %350 : vector<8x128xf32>
    %352 = vector.broadcast %cst : f32 to vector<8x128xf32>
    %353 = arith.mulf %352, %351 : vector<8x128xf32>
    %354 = arith.addf %337, %353 : vector<8x128xf32>
    %355 = vector.broadcast %cst_8 : f32 to vector<8x128xf32>
    %356 = arith.mulf %355, %351 : vector<8x128xf32>
    %357 = arith.addf %337, %356 : vector<8x128xf32>
    %358 = math.tanh %357 : vector<8x128xf32>
    %359 = arith.truncf %358 : vector<8x128xf32> to vector<8x128xbf16>
    %cst_63 = arith.constant dense<0.000000e+00> : vector<8x128xf32>
    %360 = tpu.matmul %359, %3, %cst_63 {dimension_numbers = #tpu.dot_dimension_numbers<[1], [0], [0], [1], [0, 0, 1, 1], [], []>} : vector<8x128xbf16>, vector<128x128xbf16>, vector<8x128xf32> -> vector<8x128xf32>
    %361 = arith.subf %360, %357 : vector<8x128xf32>
    %362 = arith.addf %361, %345 : vector<8x128xf32>
    %363 = vector.broadcast %4 : vector<1x128xf32> to vector<8x128xf32>
    %364 = arith.mulf %362, %363 : vector<8x128xf32>
    %365 = vector.broadcast %cst_9 : f32 to vector<8x128xf32>
    %366 = arith.mulf %365, %364 : vector<8x128xf32>
    %367 = arith.addf %354, %366 : vector<8x128xf32>
    %368 = vector.broadcast %cst_8 : f32 to vector<8x128xf32>
    %369 = arith.mulf %368, %364 : vector<8x128xf32>
    %370 = arith.addf %337, %369 : vector<8x128xf32>
    %371 = math.tanh %370 : vector<8x128xf32>
    %372 = arith.truncf %371 : vector<8x128xf32> to vector<8x128xbf16>
    %cst_64 = arith.constant dense<0.000000e+00> : vector<8x128xf32>
    %373 = tpu.matmul %372, %3, %cst_64 {dimension_numbers = #tpu.dot_dimension_numbers<[1], [0], [0], [1], [0, 0, 1, 1], [], []>} : vector<8x128xbf16>, vector<128x128xbf16>, vector<8x128xf32> -> vector<8x128xf32>
    %374 = arith.subf %373, %370 : vector<8x128xf32>
    %375 = arith.addf %374, %345 : vector<8x128xf32>
    %376 = vector.broadcast %4 : vector<1x128xf32> to vector<8x128xf32>
    %377 = arith.mulf %375, %376 : vector<8x128xf32>
    %378 = vector.broadcast %cst_9 : f32 to vector<8x128xf32>
    %379 = arith.mulf %378, %377 : vector<8x128xf32>
    %380 = arith.addf %367, %379 : vector<8x128xf32>
    %381 = vector.broadcast %cst_10 : f32 to vector<8x128xf32>
    %382 = arith.mulf %381, %377 : vector<8x128xf32>
    %383 = arith.addf %337, %382 : vector<8x128xf32>
    %384 = math.tanh %383 : vector<8x128xf32>
    %385 = arith.truncf %384 : vector<8x128xf32> to vector<8x128xbf16>
    %cst_65 = arith.constant dense<0.000000e+00> : vector<8x128xf32>
    %386 = tpu.matmul %385, %3, %cst_65 {dimension_numbers = #tpu.dot_dimension_numbers<[1], [0], [0], [1], [0, 0, 1, 1], [], []>} : vector<8x128xbf16>, vector<128x128xbf16>, vector<8x128xf32> -> vector<8x128xf32>
    %387 = arith.subf %386, %383 : vector<8x128xf32>
    %388 = arith.addf %387, %345 : vector<8x128xf32>
    %389 = vector.broadcast %4 : vector<1x128xf32> to vector<8x128xf32>
    %390 = arith.mulf %388, %389 : vector<8x128xf32>
    %391 = vector.broadcast %cst : f32 to vector<8x128xf32>
    %392 = arith.mulf %391, %390 : vector<8x128xf32>
    %393 = arith.addf %380, %392 : vector<8x128xf32>
    %394 = math.tanh %393 : vector<8x128xf32>
    %395 = arith.index_cast %c6_i32 : i32 to index
    %c0_66 = arith.constant 0 : index
    %c0_67 = arith.constant 0 : index
    %396 = vector.load %arg5[%395, %c0_66, %c0_67] : memref<7x8x128xf32, #tpu.memory_space<vmem>>, vector<1x8x128xf32>
    %397 = vector.shape_cast %396 : vector<1x8x128xf32> to vector<8x128xf32>
    %398 = vector.shape_cast %394 : vector<8x128xf32> to vector<1x8x128xf32>
    tpu.vector_store %arg5[%395, %c0_66, %c0_67], %398 {strides = array<i32>} : memref<7x8x128xf32, #tpu.memory_space<vmem>>, vector<1x8x128xf32>,
    %c7_i32 = arith.constant 7 : i32
    %c0_68 = arith.constant 0 : index
    %c0_69 = arith.constant 0 : index
    %399 = vector.load %arg6[%c0_68, %c0_69] : memref<8x128xf32, #tpu.memory_space<vmem>>, vector<8x128xf32>
    tpu.vector_store %arg6[%c0_68, %c0_69], %393 {strides = array<i32>} : memref<8x128xf32, #tpu.memory_space<vmem>>, vector<8x128xf32>,
    %c0_70 = arith.constant 0 : index
    %c0_71 = arith.constant 0 : index
    %400 = vector.load %arg7[%c0_70, %c0_71] : memref<8x128xf32, #tpu.memory_space<vmem>>, vector<8x128xf32>
    tpu.vector_store %arg7[%c0_70, %c0_71], %394 {strides = array<i32>} : memref<8x128xf32, #tpu.memory_space<vmem>>, vector<8x128xf32>,
    return
  }
  func.func @transform_0(%arg0: i32, %arg1: i32) -> (i32, i32, i32) {
    %c0_i32 = arith.constant 0 : i32
    %c0_i32_0 = arith.constant 0 : i32
    return %arg1, %arg0, %c0_i32 : i32, i32, i32
  }
  func.func @transform_1(%arg0: i32, %arg1: i32) -> (i32, i32) {
    %c0_i32 = arith.constant 0 : i32
    %c0_i32_0 = arith.constant 0 : i32
    %c0_i32_1 = arith.constant 0 : i32
    return %c0_i32, %c0_i32_0 : i32, i32
  }
  func.func @transform_2(%arg0: i32, %arg1: i32) -> (i32, i32) {
    %c0_i32 = arith.constant 0 : i32
    %c0_i32_0 = arith.constant 0 : i32
    %c0_i32_1 = arith.constant 0 : i32
    return %c0_i32, %c0_i32_0 : i32, i32
  }
  func.func @transform_3(%arg0: i32, %arg1: i32) -> (i32, i32, i32) {
    %c0_i32 = arith.constant 0 : i32
    %c0_i32_0 = arith.constant 0 : i32
    return %arg1, %arg0, %c0_i32 : i32, i32, i32
  }
}

</mosaic_0001>

<llo_original>
// kernel: liquid_neural_network_forward.1
$region0: #{liquid_neural_network_forward.1}
  #allocation0 [shape = 'u32[]', space=smem, size = 0x4, offset = 0x4, fixed_abs, tag = 'smem constant byte address 0x4 - core index']
  #allocation1 [shape = 'u32[72,128]{1,0:T(1,128)}', space=vmem, size = 0x9000, scoped, tag = 'internal scratch']
  #allocation2 [shape = 'f32[8,128]{1,0:T(8,128)}', space=vmem, size = 0x1000, scoped, tag = 'scratch operand']
  #allocation3 [shape = 'f32[8,128]{1,0:T(8,128)}', space=vmem, size = 0x1000, scoped, tag = 'scratch operand']
  %s0 = inlined_call_operand.vmem [shape: f32[7,8,128], index: 0, kind: input, shape index: {}]
  %s1 = inlined_call_operand.vmem [shape: bf16[128,128], index: 1, kind: input, shape index: {}]
  %s2 = inlined_call_operand.vmem [shape: f32[1,128], index: 2, kind: input, shape index: {}]
  %s3 = inlined_call_operand.vmem [shape: f32[7,8,128], index: 3, kind: output, shape index: {}]
  %s4 = sld [smem:[#allocation0]]
  $region26: #{liquid_neural_network_forward.1} parent=0
    _
  %s6 = ssub.s32 1, %s4
  %s7 = scalar_select 0, %s6, %s4
  // Predicated region
  $region2: #{liquid_neural_network_forward.1} parent=0 // pred_check
    _
  $region3: #{liquid_neural_network_forward.1} parent=0 // pred_check_branch
    %9 = sbr.rel (0) target = $region5
  $region4: #{liquid_neural_network_forward.1} parent=0 // pred_region
    _
  $region5: #{liquid_neural_network_forward.1} parent=0 // pred_fallthru
    _
  // Predicated region
  $region6: #{liquid_neural_network_forward.1} parent=0 // pred_check
    _
  $region7: #{liquid_neural_network_forward.1} parent=0 // pred_check_branch
    %11 = sbr.rel (0) target = $region9
  $region8: #{liquid_neural_network_forward.1} parent=0 // pred_region
    _
  $region9: #{liquid_neural_network_forward.1} parent=0 // pred_fallthru
    _
  // Predicated region
  $region10: #{liquid_neural_network_forward.1} parent=0 // pred_check
    _
  $region11: #{liquid_neural_network_forward.1} parent=0 // pred_check_branch
    %13 = sbr.rel (0) target = $region13
  $region12: #{liquid_neural_network_forward.1} parent=0 // pred_region
    _
  $region13: #{liquid_neural_network_forward.1} parent=0 // pred_fallthru
    _
  %p14 = scmp.eq.s32.totalorder 0, 0
  // Predicated region
  $region14: #{liquid_neural_network_forward.1} parent=0 // pred_check
    %p15 = pneg %p14
  $region15: #{liquid_neural_network_forward.1} parent=0 // pred_check_branch
    %17 = sbr.rel (%p15) target = $region17
  $region16: #{liquid_neural_network_forward.1} parent=0 // pred_region
    %18 = vst [vmem:[#allocation2] sm:$0xff] 0.0
    %19 = vst [vmem:[#allocation3] sm:$0xff] 0.0
  $region17: #{liquid_neural_network_forward.1} parent=0 // pred_fallthru
    _
  %v20 = vld [vmem:[%s1] sm:$0xf]
  %v21 = vld [vmem:[%s1 + $0x4] sm:$0xf]
  %v22 = vld [vmem:[%s1 + $0x8] sm:$0xf]
  %v23 = vld [vmem:[%s1 + $0xc] sm:$0xf]
  %v24 = vld [vmem:[%s1 + $0x10] sm:$0xf]
  %v25 = vld [vmem:[%s1 + $0x14] sm:$0xf]
  %v26 = vld [vmem:[%s1 + $0x18] sm:$0xf]
  %v27 = vld [vmem:[%s1 + $0x1c] sm:$0xf]
  %v28 = vld [vmem:[%s1 + $0x20] sm:$0xf]
  %v29 = vld [vmem:[%s1 + $0x24] sm:$0xf]
  %v30 = vld [vmem:[%s1 + $0x28] sm:$0xf]
  %v31 = vld [vmem:[%s1 + $0x2c] sm:$0xf]
  %v32 = vld [vmem:[%s1 + $0x30] sm:$0xf]
  %v33 = vld [vmem:[%s1 + $0x34] sm:$0xf]
  %v34 = vld [vmem:[%s1 + $0x38] sm:$0xf]
  %v35 = vld [vmem:[%s1 + $0x3c] sm:$0xf]
  %v36 = vld [vmem:[%s2] sm:$0x1]
  %v37 = vld [vmem:[#allocation2] sm:$0xff]
  %v38 = vld [vmem:[#allocation3] sm:$0xff]
  %v39 = vld [vmem:[%s0] sm:$0xff]
  %v40 = vpack.c.bf16 %v38, %v38
  %v57 = vunpack.c.l.b16 %v20
  %v58 = vunpack.c.l.b16 %v21
  %v59 = vunpack.c.l.b16 %v22
  %v60 = vunpack.c.l.b16 %v23
  %v61 = vunpack.c.l.b16 %v24
  %v62 = vunpack.c.l.b16 %v25
  %v63 = vunpack.c.l.b16 %v26
  %v64 = vunpack.c.l.b16 %v27
  %v65 = vunpack.c.l.b16 %v28
  %v66 = vunpack.c.l.b16 %v29
  %v67 = vunpack.c.l.b16 %v30
  %v68 = vunpack.c.l.b16 %v31
  %v69 = vunpack.c.l.b16 %v32
  %v70 = vunpack.c.l.b16 %v33
  %v71 = vunpack.c.l.b16 %v34
  %v72 = vunpack.c.l.b16 %v35
  %v73 = vpack.c.b16 %v58, %v57
  %v74 = vpack.c.b16 %v60, %v59
  %v75 = vpack.c.b16 %v62, %v61
  %v76 = vpack.c.b16 %v64, %v63
  %v77 = vpack.c.b16 %v66, %v65
  %v78 = vpack.c.b16 %v68, %v67
  %v79 = vpack.c.b16 %v70, %v69
  %v80 = vpack.c.b16 %v72, %v71
  %89 = vmatpush.bf16.msra.mxu0 %v80
  %90 = vmatpush.bf16.msra.mxu0 %v79
  %91 = vmatpush.bf16.msra.mxu0 %v78
  %92 = vmatpush.bf16.msra.mxu0 %v77
  %93 = vmatpush.bf16.msra.mxu0 %v76
  %94 = vmatpush.bf16.msra.mxu0 %v75
  %95 = vmatpush.bf16.msra.mxu0 %v74
  %96 = vmatpush.bf16.msra.mxu0 %v73
  %97 = vmatmul.bf16.gmra.mxu0 %v40
  %v98 = vpop.f32.mrf.mxu0
  %v99 = vadd.f32 0.0, %v98
  %v100 = vpop.f32.mrf.mxu0
  %101 = vdwg.mxu0
  %v102 = vsub.f32 %v99, %v37
  %v103 = vadd.f32 %v102, %v39
  %v105 = vperm.slane %v36, 0
  %v107 = vmul.f32 %v103, %v105
  %v108 = vmul.f32 %v107, 0.023809524
  %v109 = vadd.f32 %v37, %v108
  %v110 = vmul.f32 %v107, 0.071428575
  %v111 = vadd.f32 %v37, %v110
  %v112 = vtanh.pop %v111
  %v113 = vpack.c.bf16 %v112, %v112
  %114 = vmatpush.bf16.msra.mxu0 %v80
  %115 = vmatpush.bf16.msra.mxu0 %v79
  %116 = vmatpush.bf16.msra.mxu0 %v78
  %117 = vmatpush.bf16.msra.mxu0 %v77
  %118 = vmatpush.bf16.msra.mxu0 %v76
  %119 = vmatpush.bf16.msra.mxu0 %v75
  %120 = vmatpush.bf16.msra.mxu0 %v74
  %121 = vmatpush.bf16.msra.mxu0 %v73
  %122 = vmatmul.bf16.gmra.mxu0 %v113
  %v123 = vpop.f32.mrf.mxu0
  %v124 = vadd.f32 0.0, %v123
  %v125 = vpop.f32.mrf.mxu0
  %126 = vdwg.mxu0
  %v127 = vsub.f32 %v124, %v111
  %v128 = vadd.f32 %v127, %v39
  %v129 = vmul.f32 %v128, %v105
  %v130 = vmul.f32 %v129, 0.04761905
  %v131 = vadd.f32 %v109, %v130
  %v132 = vmul.f32 %v129, 0.071428575
  %v133 = vadd.f32 %v37, %v132
  %v134 = vtanh.pop %v133
  %v135 = vpack.c.bf16 %v134, %v134
  %136 = vmatpush.bf16.msra.mxu0 %v80
  %137 = vmatpush.bf16.msra.mxu0 %v79
  %138 = vmatpush.bf16.msra.mxu0 %v78
  %139 = vmatpush.bf16.msra.mxu0 %v77
  %140 = vmatpush.bf16.msra.mxu0 %v76
  %141 = vmatpush.bf16.msra.mxu0 %v75
  %142 = vmatpush.bf16.msra.mxu0 %v74
  %143 = vmatpush.bf16.msra.mxu0 %v73
  %144 = vmatmul.bf16.gmra.mxu0 %v135
  %v145 = vpop.f32.mrf.mxu0
  %v146 = vadd.f32 0.0, %v145
  %v147 = vpop.f32.mrf.mxu0
  %148 = vdwg.mxu0
  %v149 = vsub.f32 %v146, %v133
  %v150 = vadd.f32 %v149, %v39
  %v151 = vmul.f32 %v150, %v105
  %v152 = vmul.f32 %v151, 0.04761905
  %v153 = vadd.f32 %v131, %v152
  %v154 = vmul.f32 %v151, 0.14285715
  %v155 = vadd.f32 %v37, %v154
  %v156 = vtanh.pop %v155
  %v157 = vpack.c.bf16 %v156, %v156
  %158 = vmatpush.bf16.msra.mxu0 %v80
  %159 = vmatpush.bf16.msra.mxu0 %v79
  %160 = vmatpush.bf16.msra.mxu0 %v78
  %161 = vmatpush.bf16.msra.mxu0 %v77
  %162 = vmatpush.bf16.msra.mxu0 %v76
  %163 = vmatpush.bf16.msra.mxu0 %v75
  %164 = vmatpush.bf16.msra.mxu0 %v74
  %165 = vmatpush.bf16.msra.mxu0 %v73
  %166 = vmatmul.bf16.gmra.mxu0 %v157
  %v167 = vpop.f32.mrf.mxu0
  %v168 = vadd.f32 0.0, %v167
  %v169 = vpop.f32.mrf.mxu0
  %170 = vdwg.mxu0
  %v171 = vsub.f32 %v168, %v155
  %v172 = vadd.f32 %v171, %v39
  %v173 = vmul.f32 %v172, %v105
  %v174 = vmul.f32 %v173, 0.023809524
  %v175 = vadd.f32 %v153, %v174
  %v176 = vtanh.pop %v175
  %177 = vst [vmem:[%s3] sm:$0xff] %v176
  %s178 = scalar_lea.vmem %s0, 8
  %v179 = vld [vmem:[%s178] sm:$0xff]
  %v180 = vpack.c.bf16 %v176, %v176
  %181 = vmatpush.bf16.msra.mxu0 %v80
  %182 = vmatpush.bf16.msra.mxu0 %v79
  %183 = vmatpush.bf16.msra.mxu0 %v78
  %184 = vmatpush.bf16.msra.mxu0 %v77
  %185 = vmatpush.bf16.msra.mxu0 %v76
  %186 = vmatpush.bf16.msra.mxu0 %v75
  %187 = vmatpush.bf16.msra.mxu0 %v74
  %188 = vmatpush.bf16.msra.mxu0 %v73
  %189 = vmatmul.bf16.gmra.mxu0 %v180
  %v190 = vpop.f32.mrf.mxu0
  %v191 = vadd.f32 0.0, %v190
  %v192 = vpop.f32.mrf.mxu0
  %193 = vdwg.mxu0
  %v194 = vsub.f32 %v191, %v175
  %v195 = vadd.f32 %v194, %v179
  %v196 = vmul.f32 %v195, %v105
  %v197 = vmul.f32 %v196, 0.023809524
  %v198 = vadd.f32 %v175, %v197
  %v199 = vmul.f32 %v196, 0.071428575
  %v200 = vadd.f32 %v175, %v199
  %v201 = vtanh.pop %v200
  %v202 = vpack.c.bf16 %v201, %v201
  %203 = vmatpush.bf16.msra.mxu0 %v80
  %204 = vmatpush.bf16.msra.mxu0 %v79
  %205 = vmatpush.bf16.msra.mxu0 %v78
  %206 = vmatpush.bf16.msra.mxu0 %v77
  %207 = vmatpush.bf16.msra.mxu0 %v76
  %208 = vmatpush.bf16.msra.mxu0 %v75
  %209 = vmatpush.bf16.msra.mxu0 %v74
  %210 = vmatpush.bf16.msra.mxu0 %v73
  %211 = vmatmul.bf16.gmra.mxu0 %v202
  %v212 = vpop.f32.mrf.mxu0
  %v213 = vadd.f32 0.0, %v212
  %v214 = vpop.f32.mrf.mxu0
  %215 = vdwg.mxu0
  %v216 = vsub.f32 %v213, %v200
  %v217 = vadd.f32 %v216, %v179
  %v218 = vmul.f32 %v217, %v105
  %v219 = vmul.f32 %v218, 0.04761905
  %v220 = vadd.f32 %v198, %v219
  %v221 = vmul.f32 %v218, 0.071428575
  %v222 = vadd.f32 %v175, %v221
  %v223 = vtanh.pop %v222
  %v224 = vpack.c.bf16 %v223, %v223
  %225 = vmatpush.bf16.msra.mxu0 %v80
  %226 = vmatpush.bf16.msra.mxu0 %v79
  %227 = vmatpush.bf16.msra.mxu0 %v78
  %228 = vmatpush.bf16.msra.mxu0 %v77
  %229 = vmatpush.bf16.msra.mxu0 %v76
  %230 = vmatpush.bf16.msra.mxu0 %v75
  %231 = vmatpush.bf16.msra.mxu0 %v74
  %232 = vmatpush.bf16.msra.mxu0 %v73
  %233 = vmatmul.bf16.gmra.mxu0 %v224
  %v234 = vpop.f32.mrf.mxu0
  %v235 = vadd.f32 0.0, %v234
  %v236 = vpop.f32.mrf.mxu0
  %237 = vdwg.mxu0
  %v238 = vsub.f32 %v235, %v222
  %v239 = vadd.f32 %v238, %v179
  %v240 = vmul.f32 %v239, %v105
  %v241 = vmul.f32 %v240, 0.04761905
  %v242 = vadd.f32 %v220, %v241
  %v243 = vmul.f32 %v240, 0.14285715
  %v244 = vadd.f32 %v175, %v243
  %v245 = vtanh.pop %v244
  %v246 = vpack.c.bf16 %v245, %v245
  %247 = vmatpush.bf16.msra.mxu0 %v80
  %248 = vmatpush.bf16.msra.mxu0 %v79
  %249 = vmatpush.bf16.msra.mxu0 %v78
  %250 = vmatpush.bf16.msra.mxu0 %v77
  %251 = vmatpush.bf16.msra.mxu0 %v76
  %252 = vmatpush.bf16.msra.mxu0 %v75
  %253 = vmatpush.bf16.msra.mxu0 %v74
  %254 = vmatpush.bf16.msra.mxu0 %v73
  %255 = vmatmul.bf16.gmra.mxu0 %v246
  %v256 = vpop.f32.mrf.mxu0
  %v257 = vadd.f32 0.0, %v256
  %v258 = vpop.f32.mrf.mxu0
  %259 = vdwg.mxu0
  %v260 = vsub.f32 %v257, %v244
  %v261 = vadd.f32 %v260, %v179
  %v262 = vmul.f32 %v261, %v105
  %v263 = vmul.f32 %v262, 0.023809524
  %v264 = vadd.f32 %v242, %v263
  %v265 = vtanh.pop %v264
  %s266 = scalar_lea.vmem %s3, 8
  %267 = vst [vmem:[%s266] sm:$0xff] %v265
  %s268 = scalar_lea.vmem %s0, 16
  %v269 = vld [vmem:[%s268] sm:$0xff]
  %v270 = vpack.c.bf16 %v265, %v265
  %271 = vmatpush.bf16.msra.mxu0 %v80
  %272 = vmatpush.bf16.msra.mxu0 %v79
  %273 = vmatpush.bf16.msra.mxu0 %v78
  %274 = vmatpush.bf16.msra.mxu0 %v77
  %275 = vmatpush.bf16.msra.mxu0 %v76
  %276 = vmatpush.bf16.msra.mxu0 %v75
  %277 = vmatpush.bf16.msra.mxu0 %v74
  %278 = vmatpush.bf16.msra.mxu0 %v73
  %279 = vmatmul.bf16.gmra.mxu0 %v270
  %v280 = vpop.f32.mrf.mxu0
  %v281 = vadd.f32 0.0, %v280
  %v282 = vpop.f32.mrf.mxu0
  %283 = vdwg.mxu0
  %v284 = vsub.f32 %v281, %v264
  %v285 = vadd.f32 %v284, %v269
  %v286 = vmul.f32 %v285, %v105
  %v287 = vmul.f32 %v286, 0.023809524
  %v288 = vadd.f32 %v264, %v287
  %v289 = vmul.f32 %v286, 0.071428575
  %v290 = vadd.f32 %v264, %v289
  %v291 = vtanh.pop %v290
  %v292 = vpack.c.bf16 %v291, %v291
  %293 = vmatpush.bf16.msra.mxu0 %v80
  %294 = vmatpush.bf16.msra.mxu0 %v79
  %295 = vmatpush.bf16.msra.mxu0 %v78
  %296 = vmatpush.bf16.msra.mxu0 %v77
  %297 = vmatpush.bf16.msra.mxu0 %v76
  %298 = vmatpush.bf16.msra.mxu0 %v75
  %299 = vmatpush.bf16.msra.mxu0 %v74
  %300 = vmatpush.bf16.msra.mxu0 %v73
  %301 = vmatmul.bf16.gmra.mxu0 %v292
  %v302 = vpop.f32.mrf.mxu0
  %v303 = vadd.f32 0.0, %v302
  %v304 = vpop.f32.mrf.mxu0
  %305 = vdwg.mxu0
  %v306 = vsub.f32 %v303, %v290
  %v307 = vadd.f32 %v306, %v269
  %v308 = vmul.f32 %v307, %v105
  %v309 = vmul.f32 %v308, 0.04761905
  %v310 = vadd.f32 %v288, %v309
  %v311 = vmul.f32 %v308, 0.071428575
  %v312 = vadd.f32 %v264, %v311
  %v313 = vtanh.pop %v312
  %v314 = vpack.c.bf16 %v313, %v313
  %315 = vmatpush.bf16.msra.mxu0 %v80
  %316 = vmatpush.bf16.msra.mxu0 %v79
  %317 = vmatpush.bf16.msra.mxu0 %v78
  %318 = vmatpush.bf16.msra.mxu0 %v77
  %319 = vmatpush.bf16.msra.mxu0 %v76
  %320 = vmatpush.bf16.msra.mxu0 %v75
  %321 = vmatpush.bf16.msra.mxu0 %v74
  %322 = vmatpush.bf16.msra.mxu0 %v73
  %323 = vmatmul.bf16.gmra.mxu0 %v314
  %v324 = vpop.f32.mrf.mxu0
  %v325 = vadd.f32 0.0, %v324
  %v326 = vpop.f32.mrf.mxu0
  %327 = vdwg.mxu0
  %v328 = vsub.f32 %v325, %v312
  %v329 = vadd.f32 %v328, %v269
  %v330 = vmul.f32 %v329, %v105
  %v331 = vmul.f32 %v330, 0.04761905
  %v332 = vadd.f32 %v310, %v331
  %v333 = vmul.f32 %v330, 0.14285715
  %v334 = vadd.f32 %v264, %v333
  %v335 = vtanh.pop %v334
  %v336 = vpack.c.bf16 %v335, %v335
  %337 = vmatpush.bf16.msra.mxu0 %v80
  %338 = vmatpush.bf16.msra.mxu0 %v79
  %339 = vmatpush.bf16.msra.mxu0 %v78
  %340 = vmatpush.bf16.msra.mxu0 %v77
  %341 = vmatpush.bf16.msra.mxu0 %v76
  %342 = vmatpush.bf16.msra.mxu0 %v75
  %343 = vmatpush.bf16.msra.mxu0 %v74
  %344 = vmatpush.bf16.msra.mxu0 %v73
  %345 = vmatmul.bf16.gmra.mxu0 %v336
  %v346 = vpop.f32.mrf.mxu0
  %v347 = vadd.f32 0.0, %v346
  %v348 = vpop.f32.mrf.mxu0
  %349 = vdwg.mxu0
  %v350 = vsub.f32 %v347, %v334
  %v351 = vadd.f32 %v350, %v269
  %v352 = vmul.f32 %v351, %v105
  %v353 = vmul.f32 %v352, 0.023809524
  %v354 = vadd.f32 %v332, %v353
  %v355 = vtanh.pop %v354
  %s356 = scalar_lea.vmem %s3, 16
  %357 = vst [vmem:[%s356] sm:$0xff] %v355
  %s358 = scalar_lea.vmem %s0, 24
  %v359 = vld [vmem:[%s358] sm:$0xff]
  %v360 = vpack.c.bf16 %v355, %v355
  %361 = vmatpush.bf16.msra.mxu0 %v80
  %362 = vmatpush.bf16.msra.mxu0 %v79
  %363 = vmatpush.bf16.msra.mxu0 %v78
  %364 = vmatpush.bf16.msra.mxu0 %v77
  %365 = vmatpush.bf16.msra.mxu0 %v76
  %366 = vmatpush.bf16.msra.mxu0 %v75
  %367 = vmatpush.bf16.msra.mxu0 %v74
  %368 = vmatpush.bf16.msra.mxu0 %v73
  %369 = vmatmul.bf16.gmra.mxu0 %v360
  %v370 = vpop.f32.mrf.mxu0
  %v371 = vadd.f32 0.0, %v370
  %v372 = vpop.f32.mrf.mxu0
  %373 = vdwg.mxu0
  %v374 = vsub.f32 %v371, %v354
  %v375 = vadd.f32 %v374, %v359
  %v376 = vmul.f32 %v375, %v105
  %v377 = vmul.f32 %v376, 0.023809524
  %v378 = vadd.f32 %v354, %v377
  %v379 = vmul.f32 %v376, 0.071428575
  %v380 = vadd.f32 %v354, %v379
  %v381 = vtanh.pop %v380
  %v382 = vpack.c.bf16 %v381, %v381
  %383 = vmatpush.bf16.msra.mxu0 %v80
  %384 = vmatpush.bf16.msra.mxu0 %v79
  %385 = vmatpush.bf16.msra.mxu0 %v78
  %386 = vmatpush.bf16.msra.mxu0 %v77
  %387 = vmatpush.bf16.msra.mxu0 %v76
  %388 = vmatpush.bf16.msra.mxu0 %v75
  %389 = vmatpush.bf16.msra.mxu0 %v74
  %390 = vmatpush.bf16.msra.mxu0 %v73
  %391 = vmatmul.bf16.gmra.mxu0 %v382
  %v392 = vpop.f32.mrf.mxu0
  %v393 = vadd.f32 0.0, %v392
  %v394 = vpop.f32.mrf.mxu0
  %395 = vdwg.mxu0
  %v396 = vsub.f32 %v393, %v380
  %v397 = vadd.f32 %v396, %v359
  %v398 = vmul.f32 %v397, %v105
  %v399 = vmul.f32 %v398, 0.04761905
  %v400 = vadd.f32 %v378, %v399
  %v401 = vmul.f32 %v398, 0.071428575
  %v402 = vadd.f32 %v354, %v401
  %v403 = vtanh.pop %v402
  %v404 = vpack.c.bf16 %v403, %v403
  %405 = vmatpush.bf16.msra.mxu0 %v80
  %406 = vmatpush.bf16.msra.mxu0 %v79
  %407 = vmatpush.bf16.msra.mxu0 %v78
  %408 = vmatpush.bf16.msra.mxu0 %v77
  %409 = vmatpush.bf16.msra.mxu0 %v76
  %410 = vmatpush.bf16.msra.mxu0 %v75
  %411 = vmatpush.bf16.msra.mxu0 %v74
  %412 = vmatpush.bf16.msra.mxu0 %v73
  %413 = vmatmul.bf16.gmra.mxu0 %v404
  %v414 = vpop.f32.mrf.mxu0
  %v415 = vadd.f32 0.0, %v414
  %v416 = vpop.f32.mrf.mxu0
  %417 = vdwg.mxu0
  %v418 = vsub.f32 %v415, %v402
  %v419 = vadd.f32 %v418, %v359
  %v420 = vmul.f32 %v419, %v105
  %v421 = vmul.f32 %v420, 0.04761905
  %v422 = vadd.f32 %v400, %v421
  %v423 = vmul.f32 %v420, 0.14285715
  %v424 = vadd.f32 %v354, %v423
  %v425 = vtanh.pop %v424
  %v426 = vpack.c.bf16 %v425, %v425
  %427 = vmatpush.bf16.msra.mxu0 %v80
  %428 = vmatpush.bf16.msra.mxu0 %v79
  %429 = vmatpush.bf16.msra.mxu0 %v78
  %430 = vmatpush.bf16.msra.mxu0 %v77
  %431 = vmatpush.bf16.msra.mxu0 %v76
  %432 = vmatpush.bf16.msra.mxu0 %v75
  %433 = vmatpush.bf16.msra.mxu0 %v74
  %434 = vmatpush.bf16.msra.mxu0 %v73
  %435 = vmatmul.bf16.gmra.mxu0 %v426
  %v436 = vpop.f32.mrf.mxu0
  %v437 = vadd.f32 0.0, %v436
  %v438 = vpop.f32.mrf.mxu0
  %439 = vdwg.mxu0
  %v440 = vsub.f32 %v437, %v424
  %v441 = vadd.f32 %v440, %v359
  %v442 = vmul.f32 %v441, %v105
  %v443 = vmul.f32 %v442, 0.023809524
  %v444 = vadd.f32 %v422, %v443
  %v445 = vtanh.pop %v444
  %s446 = scalar_lea.vmem %s3, 24
  %447 = vst [vmem:[%s446] sm:$0xff] %v445
  %s448 = scalar_lea.vmem %s0, 32
  %v449 = vld [vmem:[%s448] sm:$0xff]
  %v450 = vpack.c.bf16 %v445, %v445
  %451 = vmatpush.bf16.msra.mxu0 %v80
  %452 = vmatpush.bf16.msra.mxu0 %v79
  %453 = vmatpush.bf16.msra.mxu0 %v78
  %454 = vmatpush.bf16.msra.mxu0 %v77
  %455 = vmatpush.bf16.msra.mxu0 %v76
  %456 = vmatpush.bf16.msra.mxu0 %v75
  %457 = vmatpush.bf16.msra.mxu0 %v74
  %458 = vmatpush.bf16.msra.mxu0 %v73
  %459 = vmatmul.bf16.gmra.mxu0 %v450
  %v460 = vpop.f32.mrf.mxu0
  %v461 = vadd.f32 0.0, %v460
  %v462 = vpop.f32.mrf.mxu0
  %463 = vdwg.mxu0
  %v464 = vsub.f32 %v461, %v444
  %v465 = vadd.f32 %v464, %v449
  %v466 = vmul.f32 %v465, %v105
  %v467 = vmul.f32 %v466, 0.023809524
  %v468 = vadd.f32 %v444, %v467
  %v469 = vmul.f32 %v466, 0.071428575
  %v470 = vadd.f32 %v444, %v469
  %v471 = vtanh.pop %v470
  %v472 = vpack.c.bf16 %v471, %v471
  %473 = vmatpush.bf16.msra.mxu0 %v80
  %474 = vmatpush.bf16.msra.mxu0 %v79
  %475 = vmatpush.bf16.msra.mxu0 %v78
  %476 = vmatpush.bf16.msra.mxu0 %v77
  %477 = vmatpush.bf16.msra.mxu0 %v76
  %478 = vmatpush.bf16.msra.mxu0 %v75
  %479 = vmatpush.bf16.msra.mxu0 %v74
  %480 = vmatpush.bf16.msra.mxu0 %v73
  %481 = vmatmul.bf16.gmra.mxu0 %v472
  %v482 = vpop.f32.mrf.mxu0
  %v483 = vadd.f32 0.0, %v482
  %v484 = vpop.f32.mrf.mxu0
  %485 = vdwg.mxu0
  %v486 = vsub.f32 %v483, %v470
  %v487 = vadd.f32 %v486, %v449
  %v488 = vmul.f32 %v487, %v105
  %v489 = vmul.f32 %v488, 0.04761905
  %v490 = vadd.f32 %v468, %v489
  %v491 = vmul.f32 %v488, 0.071428575
  %v492 = vadd.f32 %v444, %v491
  %v493 = vtanh.pop %v492
  %v494 = vpack.c.bf16 %v493, %v493
  %495 = vmatpush.bf16.msra.mxu0 %v80
  %496 = vmatpush.bf16.msra.mxu0 %v79
  %497 = vmatpush.bf16.msra.mxu0 %v78
  %498 = vmatpush.bf16.msra.mxu0 %v77
  %499 = vmatpush.bf16.msra.mxu0 %v76
  %500 = vmatpush.bf16.msra.mxu0 %v75
  %501 = vmatpush.bf16.msra.mxu0 %v74
  %502 = vmatpush.bf16.msra.mxu0 %v73
  %503 = vmatmul.bf16.gmra.mxu0 %v494
  %v504 = vpop.f32.mrf.mxu0
  %v505 = vadd.f32 0.0, %v504
  %v506 = vpop.f32.mrf.mxu0
  %507 = vdwg.mxu0
  %v508 = vsub.f32 %v505, %v492
  %v509 = vadd.f32 %v508, %v449
  %v510 = vmul.f32 %v509, %v105
  %v511 = vmul.f32 %v510, 0.04761905
  %v512 = vadd.f32 %v490, %v511
  %v513 = vmul.f32 %v510, 0.14285715
  %v514 = vadd.f32 %v444, %v513
  %v515 = vtanh.pop %v514
  %v516 = vpack.c.bf16 %v515, %v515
  %517 = vmatpush.bf16.msra.mxu0 %v80
  %518 = vmatpush.bf16.msra.mxu0 %v79
  %519 = vmatpush.bf16.msra.mxu0 %v78
  %520 = vmatpush.bf16.msra.mxu0 %v77
  %521 = vmatpush.bf16.msra.mxu0 %v76
  %522 = vmatpush.bf16.msra.mxu0 %v75
  %523 = vmatpush.bf16.msra.mxu0 %v74
  %524 = vmatpush.bf16.msra.mxu0 %v73
  %525 = vmatmul.bf16.gmra.mxu0 %v516
  %v526 = vpop.f32.mrf.mxu0
  %v527 = vadd.f32 0.0, %v526
  %v528 = vpop.f32.mrf.mxu0
  %529 = vdwg.mxu0
  %v530 = vsub.f32 %v527, %v514
  %v531 = vadd.f32 %v530, %v449
  %v532 = vmul.f32 %v531, %v105
  %v533 = vmul.f32 %v532, 0.023809524
  %v534 = vadd.f32 %v512, %v533
  %v535 = vtanh.pop %v534
  %s536 = scalar_lea.vmem %s3, 32
  %537 = vst [vmem:[%s536] sm:$0xff] %v535
  %s538 = scalar_lea.vmem %s0, 40
  %v539 = vld [vmem:[%s538] sm:$0xff]
  %v540 = vpack.c.bf16 %v535, %v535
  %541 = vmatpush.bf16.msra.mxu0 %v80
  %542 = vmatpush.bf16.msra.mxu0 %v79
  %543 = vmatpush.bf16.msra.mxu0 %v78
  %544 = vmatpush.bf16.msra.mxu0 %v77
  %545 = vmatpush.bf16.msra.mxu0 %v76
  %546 = vmatpush.bf16.msra.mxu0 %v75
  %547 = vmatpush.bf16.msra.mxu0 %v74
  %548 = vmatpush.bf16.msra.mxu0 %v73
  %549 = vmatmul.bf16.gmra.mxu0 %v540
  %v550 = vpop.f32.mrf.mxu0
  %v551 = vadd.f32 0.0, %v550
  %v552 = vpop.f32.mrf.mxu0
  %553 = vdwg.mxu0
  %v554 = vsub.f32 %v551, %v534
  %v555 = vadd.f32 %v554, %v539
  %v556 = vmul.f32 %v555, %v105
  %v557 = vmul.f32 %v556, 0.023809524
  %v558 = vadd.f32 %v534, %v557
  %v559 = vmul.f32 %v556, 0.071428575
  %v560 = vadd.f32 %v534, %v559
  %v561 = vtanh.pop %v560
  %v562 = vpack.c.bf16 %v561, %v561
  %563 = vmatpush.bf16.msra.mxu0 %v80
  %564 = vmatpush.bf16.msra.mxu0 %v79
  %565 = vmatpush.bf16.msra.mxu0 %v78
  %566 = vmatpush.bf16.msra.mxu0 %v77
  %567 = vmatpush.bf16.msra.mxu0 %v76
  %568 = vmatpush.bf16.msra.mxu0 %v75
  %569 = vmatpush.bf16.msra.mxu0 %v74
  %570 = vmatpush.bf16.msra.mxu0 %v73
  %571 = vmatmul.bf16.gmra.mxu0 %v562
  %v572 = vpop.f32.mrf.mxu0
  %v573 = vadd.f32 0.0, %v572
  %v574 = vpop.f32.mrf.mxu0
  %575 = vdwg.mxu0
  %v576 = vsub.f32 %v573, %v560
  %v577 = vadd.f32 %v576, %v539
  %v578 = vmul.f32 %v577, %v105
  %v579 = vmul.f32 %v578, 0.04761905
  %v580 = vadd.f32 %v558, %v579
  %v581 = vmul.f32 %v578, 0.071428575
  %v582 = vadd.f32 %v534, %v581
  %v583 = vtanh.pop %v582
  %v584 = vpack.c.bf16 %v583, %v583
  %585 = vmatpush.bf16.msra.mxu0 %v80
  %586 = vmatpush.bf16.msra.mxu0 %v79
  %587 = vmatpush.bf16.msra.mxu0 %v78
  %588 = vmatpush.bf16.msra.mxu0 %v77
  %589 = vmatpush.bf16.msra.mxu0 %v76
  %590 = vmatpush.bf16.msra.mxu0 %v75
  %591 = vmatpush.bf16.msra.mxu0 %v74
  %592 = vmatpush.bf16.msra.mxu0 %v73
  %593 = vmatmul.bf16.gmra.mxu0 %v584
  %v594 = vpop.f32.mrf.mxu0
  %v595 = vadd.f32 0.0, %v594
  %v596 = vpop.f32.mrf.mxu0
  %597 = vdwg.mxu0
  %v598 = vsub.f32 %v595, %v582
  %v599 = vadd.f32 %v598, %v539
  %v600 = vmul.f32 %v599, %v105
  %v601 = vmul.f32 %v600, 0.04761905
  %v602 = vadd.f32 %v580, %v601
  %v603 = vmul.f32 %v600, 0.14285715
  %v604 = vadd.f32 %v534, %v603
  %v605 = vtanh.pop %v604
  %v606 = vpack.c.bf16 %v605, %v605
  %607 = vmatpush.bf16.msra.mxu0 %v80
  %608 = vmatpush.bf16.msra.mxu0 %v79
  %609 = vmatpush.bf16.msra.mxu0 %v78
  %610 = vmatpush.bf16.msra.mxu0 %v77
  %611 = vmatpush.bf16.msra.mxu0 %v76
  %612 = vmatpush.bf16.msra.mxu0 %v75
  %613 = vmatpush.bf16.msra.mxu0 %v74
  %614 = vmatpush.bf16.msra.mxu0 %v73
  %615 = vmatmul.bf16.gmra.mxu0 %v606
  %v616 = vpop.f32.mrf.mxu0
  %v617 = vadd.f32 0.0, %v616
  %v618 = vpop.f32.mrf.mxu0
  %619 = vdwg.mxu0
  %v620 = vsub.f32 %v617, %v604
  %v621 = vadd.f32 %v620, %v539
  %v622 = vmul.f32 %v621, %v105
  %v623 = vmul.f32 %v622, 0.023809524
  %v624 = vadd.f32 %v602, %v623
  %v625 = vtanh.pop %v624
  %s626 = scalar_lea.vmem %s3, 40
  %627 = vst [vmem:[%s626] sm:$0xff] %v625
  %s628 = scalar_lea.vmem %s0, 48
  %v629 = vld [vmem:[%s628] sm:$0xff]
  %v630 = vpack.c.bf16 %v625, %v625
  %631 = vmatpush.bf16.msra.mxu0 %v80
  %632 = vmatpush.bf16.msra.mxu0 %v79
  %633 = vmatpush.bf16.msra.mxu0 %v78
  %634 = vmatpush.bf16.msra.mxu0 %v77
  %635 = vmatpush.bf16.msra.mxu0 %v76
  %636 = vmatpush.bf16.msra.mxu0 %v75
  %637 = vmatpush.bf16.msra.mxu0 %v74
  %638 = vmatpush.bf16.msra.mxu0 %v73
  %639 = vmatmul.bf16.gmra.mxu0 %v630
  %v640 = vpop.f32.mrf.mxu0
  %v641 = vadd.f32 0.0, %v640
  %v642 = vpop.f32.mrf.mxu0
  %643 = vdwg.mxu0
  %v644 = vsub.f32 %v641, %v624
  %v645 = vadd.f32 %v644, %v629
  %v646 = vmul.f32 %v645, %v105
  %v647 = vmul.f32 %v646, 0.023809524
  %v648 = vadd.f32 %v624, %v647
  %v649 = vmul.f32 %v646, 0.071428575
  %v650 = vadd.f32 %v624, %v649
  %v651 = vtanh.pop %v650
  %v652 = vpack.c.bf16 %v651, %v651
  %653 = vmatpush.bf16.msra.mxu0 %v80
  %654 = vmatpush.bf16.msra.mxu0 %v79
  %655 = vmatpush.bf16.msra.mxu0 %v78
  %656 = vmatpush.bf16.msra.mxu0 %v77
  %657 = vmatpush.bf16.msra.mxu0 %v76
  %658 = vmatpush.bf16.msra.mxu0 %v75
  %659 = vmatpush.bf16.msra.mxu0 %v74
  %660 = vmatpush.bf16.msra.mxu0 %v73
  %661 = vmatmul.bf16.gmra.mxu0 %v652
  %v662 = vpop.f32.mrf.mxu0
  %v663 = vadd.f32 0.0, %v662
  %v664 = vpop.f32.mrf.mxu0
  %665 = vdwg.mxu0
  %v666 = vsub.f32 %v663, %v650
  %v667 = vadd.f32 %v666, %v629
  %v668 = vmul.f32 %v667, %v105
  %v669 = vmul.f32 %v668, 0.04761905
  %v670 = vadd.f32 %v648, %v669
  %v671 = vmul.f32 %v668, 0.071428575
  %v672 = vadd.f32 %v624, %v671
  %v673 = vtanh.pop %v672
  %v674 = vpack.c.bf16 %v673, %v673
  %675 = vmatpush.bf16.msra.mxu0 %v80
  %676 = vmatpush.bf16.msra.mxu0 %v79
  %677 = vmatpush.bf16.msra.mxu0 %v78
  %678 = vmatpush.bf16.msra.mxu0 %v77
  %679 = vmatpush.bf16.msra.mxu0 %v76
  %680 = vmatpush.bf16.msra.mxu0 %v75
  %681 = vmatpush.bf16.msra.mxu0 %v74
  %682 = vmatpush.bf16.msra.mxu0 %v73
  %683 = vmatmul.bf16.gmra.mxu0 %v674
  %v684 = vpop.f32.mrf.mxu0
  %v685 = vadd.f32 0.0, %v684
  %v686 = vpop.f32.mrf.mxu0
  %687 = vdwg.mxu0
  %v688 = vsub.f32 %v685, %v672
  %v689 = vadd.f32 %v688, %v629
  %v690 = vmul.f32 %v689, %v105
  %v691 = vmul.f32 %v690, 0.04761905
  %v692 = vadd.f32 %v670, %v691
  %v693 = vmul.f32 %v690, 0.14285715
  %v694 = vadd.f32 %v624, %v693
  %v695 = vtanh.pop %v694
  %v696 = vpack.c.bf16 %v695, %v695
  %697 = vmatpush.bf16.msra.mxu0 %v80
  %698 = vmatpush.bf16.msra.mxu0 %v79
  %699 = vmatpush.bf16.msra.mxu0 %v78
  %700 = vmatpush.bf16.msra.mxu0 %v77
  %701 = vmatpush.bf16.msra.mxu0 %v76
  %702 = vmatpush.bf16.msra.mxu0 %v75
  %703 = vmatpush.bf16.msra.mxu0 %v74
  %704 = vmatpush.bf16.msra.mxu0 %v73
  %705 = vmatmul.bf16.gmra.mxu0 %v696
  %v706 = vpop.f32.mrf.mxu0
  %v707 = vadd.f32 0.0, %v706
  %v708 = vpop.f32.mrf.mxu0
  %709 = vdwg.mxu0
  %v710 = vsub.f32 %v707, %v694
  %v711 = vadd.f32 %v710, %v629
  %v712 = vmul.f32 %v711, %v105
  %v713 = vmul.f32 %v712, 0.023809524
  %v714 = vadd.f32 %v692, %v713
  %v715 = vtanh.pop %v714
  %s716 = scalar_lea.vmem %s3, 48
  %717 = vst [vmem:[%s716] sm:$0xff] %v715
  %718 = vst [vmem:[#allocation2] sm:$0xff] %v714
  %719 = vst [vmem:[#allocation3] sm:$0xff] %v715
  // Predicated region
  $region18: #{liquid_neural_network_forward.1} parent=0 // pred_check
    _
  $region19: #{liquid_neural_network_forward.1} parent=0 // pred_check_branch
    %721 = sbr.rel (0) target = $region21
  $region20: #{liquid_neural_network_forward.1} parent=0 // pred_region
    _
  $region21: #{liquid_neural_network_forward.1} parent=0 // pred_fallthru
    _
  // Predicated region
  $region22: #{liquid_neural_network_forward.1} parent=0 // pred_check
    _
  $region23: #{liquid_neural_network_forward.1} parent=0 // pred_check_branch
    %723 = sbr.rel (0) target = $region25
  $region24: #{liquid_neural_network_forward.1} parent=0 // pred_region
    _
  $region25: #{liquid_neural_network_forward.1} parent=0 // pred_fallthru
    _

</llo_original>
